<compile_context>
chip_gen: v6e
topology: v6e:2x2x1
jax: 0.10.0
libtpu: 0.0.40
codegen_flags: <defaults>
</compile_context>

<pallas_src>
import numpy as np
import jax
import jax.numpy as jnp
from jax.experimental import pallas as pl
from jax.experimental.pallas import tpu as pltpu

# ----- hyperparameters -----
IN_CH = 4
OUT_CH = 16
KH = KW = 4
CONV_STRIDE = 1
POOL = KH // 2                              # MaxPool2d(kernel_size // 2) -> kernel=2, stride=2
N_CLASSES = 10
NPAD = 128                                  # lane-dense padded class dimension
H = W = 12                                  # conv out 9x9 -> pool 4x4 -> 16*4*4 = 256
OH = (H - KH) // CONV_STRIDE + 1            # 9
POOL_OH = OH // POOL                        # 4 (floor-mode pooling drops the 9th row/col)
P = POOL_OH * POOL_OH                       # 16 pooled spatial positions
KDIM = IN_CH * KH * KW                      # 64 patch size
T = POOL * POOL                             # 4 pool-window offsets
FDIM = P * OUT_CH                           # 256 flatten dim (PyTorch order c*16 + p)
NCONV = T * FDIM                            # 1024 conv-GEMM output columns
XDIM = IN_CH * H * W                        # 576 raw input features
KFLAT = ((XDIM + 127) // 128) * 128         # 640 lane-dense (zero-padded) input width


def _cnn_classifier_kernel(x_ref, wconv_ref, cbias_ref, wlin_ref, lbias_ref, out_ref):
    # x_ref:     (TB, KFLAT)       raw flattened input (zero-padded 576 -> 640)
    # wconv_ref: (KFLAT, NCONV)    Toeplitz-style conv weight (im2col folded in)
    # cbias_ref: (1, NCONV)        conv bias broadcast to all (t, p) columns
    # wlin_ref:  (FDIM, NPAD)      Linear weight^T, classes zero-padded 10 -> 128
    # lbias_ref: (1, NPAD)
    # out_ref:   (TB, NPAD)

    # Conv2d for ALL pool offsets & pooled positions as ONE lane-dense GEMM.
    conv = jnp.dot(x_ref[...], wconv_ref[...], preferred_element_type=jnp.float32)
    conv = jnp.maximum(conv + cbias_ref[...], 0.0)          # bias + ReLU, once

    # MaxPool2d(2): elementwise max over the T=4 offset groups.
    # Slices are static and 256-column (2 lane-tile) aligned -> no relayout.
    pooled = conv[:, 0:FDIM]
    for t in range(1, T):
        pooled = jnp.maximum(pooled, conv[:, t * FDIM:(t + 1) * FDIM])

    # Flatten is already done (column order c*16 + p == PyTorch Flatten order).
    # Final Linear as ONE GEMM (TB, 256) x (256, 128-padded).
    out_ref[...] = (jnp.dot(pooled, wlin_ref[...], preferred_element_type=jnp.float32)
                    + lbias_ref[...])


def _choose_tb(batch):
    """Batch tile: big enough to amortize per-step pipeline overhead, >=2 grid
    steps when the batch allows (v7x dual TensorCores), multiple of 8, and small
    enough that 2x input block + conv temp + resident weights fit comfortably
    under the 32 MiB scoped-VMEM limit on every generation."""
    if batch >= 2048:
        return 1024
    if batch >= 1024:
        return 512
    if batch >= 512:
        return 256
    if batch >= 256:
        return 128
    if batch >= 128:
        return 64
    return max(8, ((batch + 7) // 8) * 8)   # small batches: one padded step


def _im2col_indices():
    """Static map: (pool offset t, pooled position p, patch element k) -> flat x index."""
    idx = np.zeros((T, P, KDIM), np.int32)
    for di in range(POOL):
        for dj in range(POOL):
            t = di * POOL + dj
            for i in range(POOL_OH):
                for j in range(POOL_OH):
                    p = i * POOL_OH + j
                    oh = POOL * i + di
                    ow = POOL * j + dj
                    k = 0
                    for c in range(IN_CH):
                        for ki in range(KH):
                            for kj in range(KW):
                                idx[t, p, k] = c * H * W + (oh + ki) * W + (ow + kj)
                                k += 1
    return idx


_IDX = _im2col_indices()
_ROWS = np.broadcast_to(_IDX[:, :, None, :], (T, P, OUT_CH, KDIM)).reshape(-1)
_COLS = np.broadcast_to(
    np.arange(T)[:, None, None, None] * FDIM
    + np.arange(OUT_CH)[None, None, :, None] * P
    + np.arange(P)[None, :, None, None],
    (T, P, OUT_CH, KDIM)).reshape(-1)


def _build_conv_gemm_params(conv_w, conv_b):
    """Fold conv + im2col into a constant (KFLAT, NCONV) weight and (1, NCONV) bias.
    Column order: t*256 + c*16 + p, so each 256-column group is already in
    PyTorch Flatten order (c * 16 + p)."""
    wk = conv_w.reshape(OUT_CH, KDIM).astype(jnp.float32)    # OIHW -> (O, 64)
    vals = jnp.broadcast_to(wk[None, None, :, :], (T, P, OUT_CH, KDIM)).reshape(-1)
    wconv = jnp.zeros((KFLAT, NCONV), jnp.float32).at[_ROWS, _COLS].set(vals)
    cbias = jnp.tile(jnp.repeat(conv_b.astype(jnp.float32), P), T).reshape(1, NCONV)
    return wconv, cbias


def cnn_classifier_forward(x, conv_w, conv_b, lin_w, lin_b):
    """x: (B, C, H, W) float32; conv_w: (OUT_CH, IN_CH, KH, KW); conv_b: (OUT_CH,);
    lin_w: (N_CLASSES, 256) (PyTorch layout); lin_b: (N_CLASSES,)."""
    B = x.shape[0]
    TB = _choose_tb(B)
    Bp = ((B + TB - 1) // TB) * TB

    # Raw input only: flatten NCHW -> (B, 576), zero-pad to (Bp, 640) lane-dense.
    x_flat = x.reshape(B, XDIM).astype(jnp.float32)
    x_pad = jnp.zeros((Bp, KFLAT), jnp.float32).at[:B, :XDIM].set(x_flat)

    wconv, cbias = _build_conv_gemm_params(conv_w, conv_b)
    wlin = jnp.zeros((FDIM, NPAD), jnp.float32).at[:, :N_CLASSES].set(
        lin_w.astype(jnp.float32).T)
    lbias = jnp.zeros((1, NPAD), jnp.float32).at[0, :N_CLASSES].set(
        lin_b.astype(jnp.float32))

    flops = Bp * (2 * KFLAT * NCONV + 2 * FDIM * NPAD)
    bytes_accessed = 4 * (Bp * KFLAT + Bp * NPAD + KFLAT * NCONV + NCONV
                          + FDIM * NPAD + NPAD)

    out = pl.pallas_call(
        _cnn_classifier_kernel,
        out_shape=jax.ShapeDtypeStruct((Bp, NPAD), jnp.float32),
        grid_spec=pltpu.PrefetchScalarGridSpec(
            num_scalar_prefetch=0,
            grid=(Bp // TB,),
            in_specs=[
                pl.BlockSpec((TB, KFLAT), lambda b: (b, 0)),
                pl.BlockSpec((KFLAT, NCONV), lambda b: (0, 0)),
                pl.BlockSpec((1, NCONV), lambda b: (0, 0)),
                pl.BlockSpec((FDIM, NPAD), lambda b: (0, 0)),
                pl.BlockSpec((1, NPAD), lambda b: (0, 0)),
            ],
            out_specs=pl.BlockSpec((TB, NPAD), lambda b: (b, 0)),
        ),
        compiler_params=pltpu.CompilerParams(
            dimension_semantics=("parallel",),
            vmem_limit_bytes=32 * 1024 * 1024),
        cost_estimate=pl.CostEstimate(flops=flops, transcendentals=0,
                                      bytes_accessed=bytes_accessed),
    )(x_pad, wconv, cbias, wlin, lbias)
    return out[:B, :N_CLASSES]


def reference_forward(x, conv_w, conv_b, lin_w, lin_b):
    """Pure-JAX replica of the PyTorch forward (for validation)."""
    conv = jax.lax.conv_general_dilated(
        x, conv_w, window_strides=(CONV_STRIDE, CONV_STRIDE), padding="VALID",
        dimension_numbers=("NCHW", "OIHW", "NCHW"))
    conv = conv + conv_b[None, :, None, None]
    conv = jnp.maximum(conv, 0.0)
    pooled = jax.lax.reduce_window(
        conv, -jnp.inf, jax.lax.max,
        window_dimensions=(1, 1, POOL, POOL),
        window_strides=(1, 1, POOL, POOL), padding="VALID")
    flat = pooled.reshape(x.shape[0], -1)
    return flat @ lin_w.T + lin_b
    # NOTE: lin_activation is constructed in the PyTorch __init__ but never added to
    # the Sequential, so it is (correctly) not applied here either.
    # TODO(synk): logging.info of the output shape is Python-side only; omitted.


if __name__ == "__main__":
    key = jax.random.PRNGKey(0)
    k1, k2, k3, k4, k5 = jax.random.split(key, 5)
    B = 2
    x = jax.random.normal(k1, (B, IN_CH, H, W), jnp.float32)
    conv_w = jax.random.normal(k2, (OUT_CH, IN_CH, KH, KW), jnp.float32) * 0.1
    conv_b = jax.random.normal(k3, (OUT_CH,), jnp.float32) * 0.1
    lin_w = jax.random.normal(k4, (N_CLASSES, OUT_CH * P), jnp.float32) * 0.05
    lin_b = jax.random.normal(k5, (N_CLASSES,), jnp.float32) * 0.05

    out = cnn_classifier_forward(x, conv_w, conv_b, lin_w, lin_b)
    out = jax.block_until_ready(out)

    ref = reference_forward(x, conv_w, conv_b, lin_w, lin_b)
    ref = jax.block_until_ready(ref)

    assert out.shape == (B, N_CLASSES)
    np.testing.assert_allclose(np.asarray(out), np.asarray(ref), rtol=1e-4, atol=1e-4)
    print("KERNEL_OK")
</pallas_src>

<mosaic_0001>
module attributes {stable_mosaic.version = 11 : i64} {
  func.func @_cnn_classifier_kernel(%arg0: i32, %arg1: memref<8x640xf32, #tpu.memory_space<vmem>>, %arg2: memref<640x1024xf32, #tpu.memory_space<vmem>>, %arg3: memref<1x1024xf32, #tpu.memory_space<vmem>>, %arg4: memref<256x128xf32, #tpu.memory_space<vmem>>, %arg5: memref<1x128xf32, #tpu.memory_space<vmem>>, %arg6: memref<8x128xf32, #tpu.memory_space<vmem>>) attributes {dimension_semantics = [#tpu.dimension_semantics<parallel>], iteration_bounds = array<i64: 1>, scalar_prefetch = 0 : i64, scratch_operands = 0 : i64, tpu.core_type = #tpu.core_type<tc>, window_params = [{transform_indices = @transform_0, window_bounds = array<i64: 8, 640>}, {pipeline_mode = #tpu.pipeline_mode<synchronous>, transform_indices = @transform_1, window_bounds = array<i64: 640, 1024>}, {pipeline_mode = #tpu.pipeline_mode<synchronous>, transform_indices = @transform_2, window_bounds = array<i64: 1, 1024>}, {pipeline_mode = #tpu.pipeline_mode<synchronous>, transform_indices = @transform_3, window_bounds = array<i64: 256, 128>}, {pipeline_mode = #tpu.pipeline_mode<synchronous>, transform_indices = @transform_4, window_bounds = array<i64: 1, 128>}, {transform_indices = @transform_5, window_bounds = array<i64: 8, 128>}]} {
    %c0 = arith.constant 0 : index
    %c0_0 = arith.constant 0 : index
    %0 = vector.load %arg1[%c0, %c0_0] : memref<8x640xf32, #tpu.memory_space<vmem>>, vector<8x640xf32>
    %c0_1 = arith.constant 0 : index
    %c0_2 = arith.constant 0 : index
    %1 = vector.load %arg2[%c0_1, %c0_2] : memref<640x1024xf32, #tpu.memory_space<vmem>>, vector<640x1024xf32>
    %cst = arith.constant dense<0.000000e+00> : vector<8x1024xf32>
    %2 = tpu.matmul %0, %1, %cst {dimension_numbers = #tpu.dot_dimension_numbers<[1], [0], [0], [1], [0, 0, 1, 1], [], []>} : vector<8x640xf32>, vector<640x1024xf32>, vector<8x1024xf32> -> vector<8x1024xf32>
    %c0_3 = arith.constant 0 : index
    %c0_4 = arith.constant 0 : index
    %3 = vector.load %arg3[%c0_3, %c0_4] : memref<1x1024xf32, #tpu.memory_space<vmem>>, vector<1x1024xf32>
    %4 = vector.broadcast %3 : vector<1x1024xf32> to vector<8x1024xf32>
    %5 = arith.addf %2, %4 : vector<8x1024xf32>
    %cst_5 = arith.constant 0.000000e+00 : f32
    %6 = vector.broadcast %cst_5 : f32 to vector<8x1024xf32>
    %7 = arith.maximumf %5, %6 : vector<8x1024xf32>
    %8 = vector.extract_strided_slice %7 {offsets = [0, 0], sizes = [8, 256], strides = [1, 1]} : vector<8x1024xf32> to vector<8x256xf32>
    %9 = vector.extract_strided_slice %7 {offsets = [0, 256], sizes = [8, 256], strides = [1, 1]} : vector<8x1024xf32> to vector<8x256xf32>
    %10 = arith.maximumf %8, %9 : vector<8x256xf32>
    %11 = vector.extract_strided_slice %7 {offsets = [0, 512], sizes = [8, 256], strides = [1, 1]} : vector<8x1024xf32> to vector<8x256xf32>
    %12 = arith.maximumf %10, %11 : vector<8x256xf32>
    %13 = vector.extract_strided_slice %7 {offsets = [0, 768], sizes = [8, 256], strides = [1, 1]} : vector<8x1024xf32> to vector<8x256xf32>
    %14 = arith.maximumf %12, %13 : vector<8x256xf32>
    %c0_6 = arith.constant 0 : index
    %c0_7 = arith.constant 0 : index
    %15 = vector.load %arg4[%c0_6, %c0_7] : memref<256x128xf32, #tpu.memory_space<vmem>>, vector<256x128xf32>
    %cst_8 = arith.constant dense<0.000000e+00> : vector<8x128xf32>
    %16 = tpu.matmul %14, %15, %cst_8 {dimension_numbers = #tpu.dot_dimension_numbers<[1], [0], [0], [1], [0, 0, 1, 1], [], []>} : vector<8x256xf32>, vector<256x128xf32>, vector<8x128xf32> -> vector<8x128xf32>
    %c0_9 = arith.constant 0 : index
    %c0_10 = arith.constant 0 : index
    %17 = vector.load %arg5[%c0_9, %c0_10] : memref<1x128xf32, #tpu.memory_space<vmem>>, vector<1x128xf32>
    %18 = vector.broadcast %17 : vector<1x128xf32> to vector<8x128xf32>
    %19 = arith.addf %16, %18 : vector<8x128xf32>
    %c0_11 = arith.constant 0 : index
    %c0_12 = arith.constant 0 : index
    %20 = vector.load %arg6[%c0_11, %c0_12] : memref<8x128xf32, #tpu.memory_space<vmem>>, vector<8x128xf32>
    tpu.vector_store %arg6[%c0_11, %c0_12], %19 {strides = array<i32>} : memref<8x128xf32, #tpu.memory_space<vmem>>, vector<8x128xf32>,
    return
  }
  func.func @transform_0(%arg0: i32) -> (i32, i32) {
    %c0_i32 = arith.constant 0 : i32
    %c0_i32_0 = arith.constant 0 : i32
    return %arg0, %c0_i32 : i32, i32
  }
  func.func @transform_1(%arg0: i32) -> (i32, i32) {
    %c0_i32 = arith.constant 0 : i32
    %c0_i32_0 = arith.constant 0 : i32
    %c0_i32_1 = arith.constant 0 : i32
    return %c0_i32, %c0_i32_0 : i32, i32
  }
  func.func @transform_2(%arg0: i32) -> (i32, i32) {
    %c0_i32 = arith.constant 0 : i32
    %c0_i32_0 = arith.constant 0 : i32
    %c0_i32_1 = arith.constant 0 : i32
    return %c0_i32, %c0_i32_0 : i32, i32
  }
  func.func @transform_3(%arg0: i32) -> (i32, i32) {
    %c0_i32 = arith.constant 0 : i32
    %c0_i32_0 = arith.constant 0 : i32
    %c0_i32_1 = arith.constant 0 : i32
    return %c0_i32, %c0_i32_0 : i32, i32
  }
  func.func @transform_4(%arg0: i32) -> (i32, i32) {
    %c0_i32 = arith.constant 0 : i32
    %c0_i32_0 = arith.constant 0 : i32
    %c0_i32_1 = arith.constant 0 : i32
    return %c0_i32, %c0_i32_0 : i32, i32
  }
  func.func @transform_5(%arg0: i32) -> (i32, i32) {
    %c0_i32 = arith.constant 0 : i32
    %c0_i32_0 = arith.constant 0 : i32
    return %arg0, %c0_i32 : i32, i32
  }
}

</mosaic_0001>

<llo_original>
// kernel: tpu_custom_call.1
$region0: #{tpu_custom_call.1}
  #allocation0 [shape = 'u32[]', space=smem, size = 0x4, offset = 0x4, fixed_abs, tag = 'smem constant byte address 0x4 - core index']
  #allocation1 [shape = 'u32[144,128]{1,0:T(1,128)}', space=vmem, size = 0x12000, scoped, tag = 'internal scratch']
  %s0 = inlined_call_operand.hbm [shape: f32[8,640], index: 0, kind: input, shape index: {}]
  %s1 = inlined_call_operand.hbm [shape: f32[640,1024], index: 1, kind: input, shape index: {}]
  %s2 = inlined_call_operand.hbm [shape: f32[1,1024], index: 2, kind: input, shape index: {}]
  %s3 = inlined_call_operand.hbm [shape: f32[256,128], index: 3, kind: input, shape index: {}]
  %s4 = inlined_call_operand.hbm [shape: f32[1,128], index: 4, kind: input, shape index: {}]
  %s5 = inlined_call_operand.hbm [shape: f32[8,128], index: 5, kind: output, shape index: {}]
  %s6 = sld [smem:[#allocation0]]
  $region50: #{tpu_custom_call.1} parent=0
    _
  %s8 = ssub.s32 1, %s6
  %s9 = scalar_select 0, %s8, %s6
  $region1: #{tpu_custom_call.1} parent=0
    #allocation2 [shape = 'u8[20480]{0}', space=vmem, size = 0x5000, scoped, tag = 'input window, operand 0, single buffered']
    #allocation3 [shape = 's32[1]{0}', space=sflag, size = 0x4, scoped, tag = 'scoped memory for tpu_custom_call.1']
    #allocation4 [shape = 's32[1]{0}', space=sflag, size = 0x4, scoped, tag = 'scoped memory for tpu_custom_call.1']
    #allocation5 [shape = 'u8[2621440]{0}', space=vmem, size = 0x280000, scoped, tag = 'input window, operand 1, single buffered']
    #allocation6 [shape = 's32[1]{0}', space=sflag, size = 0x4, scoped, tag = 'scoped memory for tpu_custom_call.1']
    #allocation7 [shape = 'u8[4096]{0}', space=vmem, size = 0x1000, scoped, tag = 'input window, operand 2, single buffered']
    #allocation8 [shape = 'u8[131072]{0}', space=vmem, size = 0x20000, scoped, tag = 'input window, operand 3, single buffered']
    #allocation9 [shape = 's32[1]{0}', space=sflag, size = 0x4, scoped, tag = 'scoped memory for tpu_custom_call.1']
    #allocation10 [shape = 'u8[512]{0}', space=vmem, size = 0x400, scoped, tag = 'input window, operand 4, single buffered']
    #allocation11 [shape = 'u8[4096]{0}', space=vmem, size = 0x1000, scoped, tag = 'output window, operand 0, single buffered']
    %10 = vsyncpa [#allocation3], 0
    %11 = vsyncpa [#allocation6], 0
    %12 = vsyncpa [#allocation9], 0
    %13 = vsyncpa [#allocation4], 0
    // Predicated region
    $region2: #{tpu_custom_call.1} parent=1 // pred_check
      _
    $region3: #{tpu_custom_call.1} parent=1 // pred_check_branch
      %15 = sbr.rel (0) target = $region5
    $region4: #{tpu_custom_call.1} parent=1 // pred_region
      %s17 = ssub.s32 640, 640
      %18 = vsyncadd [#allocation3], %s17
      %s20 = sshll.u32 [#allocation2], 4
      %s21 = int_to_ptr.vmem [resolvable:$true] %s20
      %23 = dma.hbm_to_vmem [thread:$0]  %s0, 640, %s21, [#allocation3]
    $region5: #{tpu_custom_call.1} parent=1 // pred_fallthru
      _
    // Predicated region
    $region6: #{tpu_custom_call.1} parent=1 // pred_check
      _
    $region7: #{tpu_custom_call.1} parent=1 // pred_check_branch
      %25 = sbr.rel (0) target = $region9
    $region8: #{tpu_custom_call.1} parent=1 // pred_region
      %s27 = ssub.s32 81920, 81920
      %28 = vsyncadd [#allocation6], %s27
      %s29 = sshll.u32 [#allocation5], 4
      %s30 = int_to_ptr.vmem [resolvable:$true] %s29
      %35 = dma.hbm_to_vmem [thread:$0]  %s1, 81920, %s30, [#allocation6], 1024, 1024, 64
    $region9: #{tpu_custom_call.1} parent=1 // pred_fallthru
      _
    // Predicated region
    $region10: #{tpu_custom_call.1} parent=1 // pred_check
      _
    $region11: #{tpu_custom_call.1} parent=1 // pred_check_branch
      %37 = sbr.rel (0) target = $region13
    $region12: #{tpu_custom_call.1} parent=1 // pred_region
      %s39 = ssub.s32 128, 128
      %40 = vsyncadd [#allocation6], %s39
      %s42 = sshll.u32 [#allocation7], 4
      %s43 = int_to_ptr.vmem [resolvable:$true] %s42
      %45 = dma.hbm_to_vmem [thread:$0]  %s2, 128, %s43, [#allocation6]
    $region13: #{tpu_custom_call.1} parent=1 // pred_fallthru
      _
    // Predicated region
    $region14: #{tpu_custom_call.1} parent=1 // pred_check
      _
    $region15: #{tpu_custom_call.1} parent=1 // pred_check_branch
      %47 = sbr.rel (0) target = $region17
    $region16: #{tpu_custom_call.1} parent=1 // pred_region
      %s49 = ssub.s32 4096, 4096
      %50 = vsyncadd [#allocation9], %s49
      %s51 = sshll.u32 [#allocation8], 4
      %s52 = int_to_ptr.vmem [resolvable:$true] %s51
      %57 = dma.hbm_to_vmem [thread:$0]  %s3, 4096, %s52, [#allocation9], 128, 128, 8
    $region17: #{tpu_custom_call.1} parent=1 // pred_fallthru
      _
    // Predicated region
    $region18: #{tpu_custom_call.1} parent=1 // pred_check
      _
    $region19: #{tpu_custom_call.1} parent=1 // pred_check_branch
      %59 = sbr.rel (0) target = $region21
    $region20: #{tpu_custom_call.1} parent=1 // pred_region
      %s61 = ssub.s32 16, 16
      %62 = vsyncadd [#allocation9], %s61
      %s64 = sshll.u32 [#allocation10], 4
      %s65 = int_to_ptr.vmem [resolvable:$true] %s64
      %67 = dma.hbm_to_vmem [thread:$0]  %s4, 16, %s65, [#allocation9]
    $region21: #{tpu_custom_call.1} parent=1 // pred_fallthru
      _
    // Predicated region
    $region22: #{tpu_custom_call.1} parent=1 // pred_check
      _
    $region23: #{tpu_custom_call.1} parent=1 // pred_check_branch
      %69 = sbr.rel (0) target = $region25
    $region24: #{tpu_custom_call.1} parent=1 // pred_region
      %70 = dma.done [#allocation3], 640
    $region25: #{tpu_custom_call.1} parent=1 // pred_fallthru
      _
    // Predicated region
    $region26: #{tpu_custom_call.1} parent=1 // pred_check
      _
    $region27: #{tpu_custom_call.1} parent=1 // pred_check_branch
      %72 = sbr.rel (0) target = $region29
    $region28: #{tpu_custom_call.1} parent=1 // pred_region
      %73 = dma.done [#allocation6], 81920
    $region29: #{tpu_custom_call.1} parent=1 // pred_fallthru
      _
    // Predicated region
    $region30: #{tpu_custom_call.1} parent=1 // pred_check
      _
    $region31: #{tpu_custom_call.1} parent=1 // pred_check_branch
      %75 = sbr.rel (0) target = $region33
    $region32: #{tpu_custom_call.1} parent=1 // pred_region
      %76 = dma.done [#allocation6], 128
    $region33: #{tpu_custom_call.1} parent=1 // pred_fallthru
      _
    // Predicated region
    $region34: #{tpu_custom_call.1} parent=1 // pred_check
      _
    $region35: #{tpu_custom_call.1} parent=1 // pred_check_branch
      %78 = sbr.rel (0) target = $region37
    $region36: #{tpu_custom_call.1} parent=1 // pred_region
      %79 = dma.done [#allocation9], 4096
    $region37: #{tpu_custom_call.1} parent=1 // pred_fallthru
      _
    // Predicated region
    $region38: #{tpu_custom_call.1} parent=1 // pred_check
      _
    $region39: #{tpu_custom_call.1} parent=1 // pred_check_branch
      %81 = sbr.rel (0) target = $region41
    $region40: #{tpu_custom_call.1} parent=1 // pred_region
      %82 = dma.done [#allocation9], 16
    $region41: #{tpu_custom_call.1} parent=1 // pred_fallthru
      _
    %v83 = vld [vmem:[#allocation2] sm:$0xff]
    %v84 = vld [vmem:[#allocation2 + $0x8] sm:$0xff]
    %v85 = vld [vmem:[#allocation2 + $0x10] sm:$0xff]
    %v86 = vld [vmem:[#allocation2 + $0x18] sm:$0xff]
    %v87 = vld [vmem:[#allocation2 + $0x20] sm:$0xff]
    %v88 = vld [vmem:[#allocation5] sm:$0xff]
    %v89 = vld [vmem:[#allocation5 + $0x8] sm:$0xff]
    %v90 = vld [vmem:[#allocation5 + $0x10] sm:$0xff]
    %v91 = vld [vmem:[#allocation5 + $0x18] sm:$0xff]
    %v92 = vld [vmem:[#allocation5 + $0x20] sm:$0xff]
    %v93 = vld [vmem:[#allocation5 + $0x28] sm:$0xff]
    %v94 = vld [vmem:[#allocation5 + $0x30] sm:$0xff]
    %v95 = vld [vmem:[#allocation5 + $0x38] sm:$0xff]
    %v96 = vld [vmem:[#allocation5 + $0x40] sm:$0xff]
    %v97 = vld [vmem:[#allocation5 + $0x48] sm:$0xff]
    %v98 = vld [vmem:[#allocation5 + $0x50] sm:$0xff]
    %v99 = vld [vmem:[#allocation5 + $0x58] sm:$0xff]
    %v100 = vld [vmem:[#allocation5 + $0x60] sm:$0xff]
    %v101 = vld [vmem:[#allocation5 + $0x68] sm:$0xff]
    %v102 = vld [vmem:[#allocation5 + $0x70] sm:$0xff]
    %v103 = vld [vmem:[#allocation5 + $0x78] sm:$0xff]
    %v104 = vld [vmem:[#allocation5 + $0x80] sm:$0xff]
    %v105 = vld [vmem:[#allocation5 + $0x88] sm:$0xff]
    %v106 = vld [vmem:[#allocation5 + $0x90] sm:$0xff]
    %v107 = vld [vmem:[#allocation5 + $0x98] sm:$0xff]
    %v108 = vld [vmem:[#allocation5 + $0xa0] sm:$0xff]
    %v109 = vld [vmem:[#allocation5 + $0xa8] sm:$0xff]
    %v110 = vld [vmem:[#allocation5 + $0xb0] sm:$0xff]
    %v111 = vld [vmem:[#allocation5 + $0xb8] sm:$0xff]
    %v112 = vld [vmem:[#allocation5 + $0xc0] sm:$0xff]
    %v113 = vld [vmem:[#allocation5 + $0xc8] sm:$0xff]
    %v114 = vld [vmem:[#allocation5 + $0xd0] sm:$0xff]
    %v115 = vld [vmem:[#allocation5 + $0xd8] sm:$0xff]
    %v116 = vld [vmem:[#allocation5 + $0xe0] sm:$0xff]
    %v117 = vld [vmem:[#allocation5 + $0xe8] sm:$0xff]
    %v118 = vld [vmem:[#allocation5 + $0xf0] sm:$0xff]
    %v119 = vld [vmem:[#allocation5 + $0xf8] sm:$0xff]
    %v120 = vld [vmem:[#allocation5 + $0x100] sm:$0xff]
    %v121 = vld [vmem:[#allocation5 + $0x108] sm:$0xff]
    %v122 = vld [vmem:[#allocation5 + $0x110] sm:$0xff]
    %v123 = vld [vmem:[#allocation5 + $0x118] sm:$0xff]
    %v124 = vld [vmem:[#allocation5 + $0x120] sm:$0xff]
    %v125 = vld [vmem:[#allocation5 + $0x128] sm:$0xff]
    %v126 = vld [vmem:[#allocation5 + $0x130] sm:$0xff]
    %v127 = vld [vmem:[#allocation5 + $0x138] sm:$0xff]
    %v128 = vld [vmem:[#allocation5 + $0x140] sm:$0xff]
    %v129 = vld [vmem:[#allocation5 + $0x148] sm:$0xff]
    %v130 = vld [vmem:[#allocation5 + $0x150] sm:$0xff]
    %v131 = vld [vmem:[#allocation5 + $0x158] sm:$0xff]
    %v132 = vld [vmem:[#allocation5 + $0x160] sm:$0xff]
    %v133 = vld [vmem:[#allocation5 + $0x168] sm:$0xff]
    %v134 = vld [vmem:[#allocation5 + $0x170] sm:$0xff]
    %v135 = vld [vmem:[#allocation5 + $0x178] sm:$0xff]
    %v136 = vld [vmem:[#allocation5 + $0x180] sm:$0xff]
    %v137 = vld [vmem:[#allocation5 + $0x188] sm:$0xff]
    %v138 = vld [vmem:[#allocation5 + $0x190] sm:$0xff]
    %v139 = vld [vmem:[#allocation5 + $0x198] sm:$0xff]
    %v140 = vld [vmem:[#allocation5 + $0x1a0] sm:$0xff]
    %v141 = vld [vmem:[#allocation5 + $0x1a8] sm:$0xff]
    %v142 = vld [vmem:[#allocation5 + $0x1b0] sm:$0xff]
    %v143 = vld [vmem:[#allocation5 + $0x1b8] sm:$0xff]
    %v144 = vld [vmem:[#allocation5 + $0x1c0] sm:$0xff]
    %v145 = vld [vmem:[#allocation5 + $0x1c8] sm:$0xff]
    %v146 = vld [vmem:[#allocation5 + $0x1d0] sm:$0xff]
    %v147 = vld [vmem:[#allocation5 + $0x1d8] sm:$0xff]
    %v148 = vld [vmem:[#allocation5 + $0x1e0] sm:$0xff]
    %v149 = vld [vmem:[#allocation5 + $0x1e8] sm:$0xff]
    %v150 = vld [vmem:[#allocation5 + $0x1f0] sm:$0xff]
    %v151 = vld [vmem:[#allocation5 + $0x1f8] sm:$0xff]
    %v152 = vld [vmem:[#allocation5 + $0x200] sm:$0xff]
    %v153 = vld [vmem:[#allocation5 + $0x208] sm:$0xff]
    %v154 = vld [vmem:[#allocation5 + $0x210] sm:$0xff]
    %v155 = vld [vmem:[#allocation5 + $0x218] sm:$0xff]
    %v156 = vld [vmem:[#allocation5 + $0x220] sm:$0xff]
    %v157 = vld [vmem:[#allocation5 + $0x228] sm:$0xff]
    %v158 = vld [vmem:[#allocation5 + $0x230] sm:$0xff]
    %v159 = vld [vmem:[#allocation5 + $0x238] sm:$0xff]
    %v160 = vld [vmem:[#allocation5 + $0x240] sm:$0xff]
    %v161 = vld [vmem:[#allocation5 + $0x248] sm:$0xff]
    %v162 = vld [vmem:[#allocation5 + $0x250] sm:$0xff]
    %v163 = vld [vmem:[#allocation5 + $0x258] sm:$0xff]
    %v164 = vld [vmem:[#allocation5 + $0x260] sm:$0xff]
    %v165 = vld [vmem:[#allocation5 + $0x268] sm:$0xff]
    %v166 = vld [vmem:[#allocation5 + $0x270] sm:$0xff]
    %v167 = vld [vmem:[#allocation5 + $0x278] sm:$0xff]
    %v168 = vld [vmem:[#allocation5 + $0x280] sm:$0xff]
    %v169 = vld [vmem:[#allocation5 + $0x288] sm:$0xff]
    %v170 = vld [vmem:[#allocation5 + $0x290] sm:$0xff]
    %v171 = vld [vmem:[#allocation5 + $0x298] sm:$0xff]
    %v172 = vld [vmem:[#allocation5 + $0x2a0] sm:$0xff]
    %v173 = vld [vmem:[#allocation5 + $0x2a8] sm:$0xff]
    %v174 = vld [vmem:[#allocation5 + $0x2b0] sm:$0xff]
    %v175 = vld [vmem:[#allocation5 + $0x2b8] sm:$0xff]
    %v176 = vld [vmem:[#allocation5 + $0x2c0] sm:$0xff]
    %v177 = vld [vmem:[#allocation5 + $0x2c8] sm:$0xff]
    %v178 = vld [vmem:[#allocation5 + $0x2d0] sm:$0xff]
    %v179 = vld [vmem:[#allocation5 + $0x2d8] sm:$0xff]
    %v180 = vld [vmem:[#allocation5 + $0x2e0] sm:$0xff]
    %v181 = vld [vmem:[#allocation5 + $0x2e8] sm:$0xff]
    %v182 = vld [vmem:[#allocation5 + $0x2f0] sm:$0xff]
    %v183 = vld [vmem:[#allocation5 + $0x2f8] sm:$0xff]
    %v184 = vld [vmem:[#allocation5 + $0x300] sm:$0xff]
    %v185 = vld [vmem:[#allocation5 + $0x308] sm:$0xff]
    %v186 = vld [vmem:[#allocation5 + $0x310] sm:$0xff]
    %v187 = vld [vmem:[#allocation5 + $0x318] sm:$0xff]
    %v188 = vld [vmem:[#allocation5 + $0x320] sm:$0xff]
    %v189 = vld [vmem:[#allocation5 + $0x328] sm:$0xff]
    %v190 = vld [vmem:[#allocation5 + $0x330] sm:$0xff]
    %v191 = vld [vmem:[#allocation5 + $0x338] sm:$0xff]
    %v192 = vld [vmem:[#allocation5 + $0x340] sm:$0xff]
    %v193 = vld [vmem:[#allocation5 + $0x348] sm:$0xff]
    %v194 = vld [vmem:[#allocation5 + $0x350] sm:$0xff]
    %v195 = vld [vmem:[#allocation5 + $0x358] sm:$0xff]
    %v196 = vld [vmem:[#allocation5 + $0x360] sm:$0xff]
    %v197 = vld [vmem:[#allocation5 + $0x368] sm:$0xff]
    %v198 = vld [vmem:[#allocation5 + $0x370] sm:$0xff]
    %v199 = vld [vmem:[#allocation5 + $0x378] sm:$0xff]
    %v200 = vld [vmem:[#allocation5 + $0x380] sm:$0xff]
    %v201 = vld [vmem:[#allocation5 + $0x388] sm:$0xff]
    %v202 = vld [vmem:[#allocation5 + $0x390] sm:$0xff]
    %v203 = vld [vmem:[#allocation5 + $0x398] sm:$0xff]
    %v204 = vld [vmem:[#allocation5 + $0x3a0] sm:$0xff]
    %v205 = vld [vmem:[#allocation5 + $0x3a8] sm:$0xff]
    %v206 = vld [vmem:[#allocation5 + $0x3b0] sm:$0xff]
    %v207 = vld [vmem:[#allocation5 + $0x3b8] sm:$0xff]
    %v208 = vld [vmem:[#allocation5 + $0x3c0] sm:$0xff]
    %v209 = vld [vmem:[#allocation5 + $0x3c8] sm:$0xff]
    %v210 = vld [vmem:[#allocation5 + $0x3d0] sm:$0xff]
    %v211 = vld [vmem:[#allocation5 + $0x3d8] sm:$0xff]
    %v212 = vld [vmem:[#allocation5 + $0x3e0] sm:$0xff]
    %v213 = vld [vmem:[#allocation5 + $0x3e8] sm:$0xff]
    %v214 = vld [vmem:[#allocation5 + $0x3f0] sm:$0xff]
    %v215 = vld [vmem:[#allocation5 + $0x3f8] sm:$0xff]
    %v216 = vld [vmem:[#allocation5 + $0x400] sm:$0xff]
    %v217 = vld [vmem:[#allocation5 + $0x408] sm:$0xff]
    %v218 = vld [vmem:[#allocation5 + $0x410] sm:$0xff]
    %v219 = vld [vmem:[#allocation5 + $0x418] sm:$0xff]
    %v220 = vld [vmem:[#allocation5 + $0x420] sm:$0xff]
    %v221 = vld [vmem:[#allocation5 + $0x428] sm:$0xff]
    %v222 = vld [vmem:[#allocation5 + $0x430] sm:$0xff]
    %v223 = vld [vmem:[#allocation5 + $0x438] sm:$0xff]
    %v224 = vld [vmem:[#allocation5 + $0x440] sm:$0xff]
    %v225 = vld [vmem:[#allocation5 + $0x448] sm:$0xff]
    %v226 = vld [vmem:[#allocation5 + $0x450] sm:$0xff]
    %v227 = vld [vmem:[#allocation5 + $0x458] sm:$0xff]
    %v228 = vld [vmem:[#allocation5 + $0x460] sm:$0xff]
    %v229 = vld [vmem:[#allocation5 + $0x468] sm:$0xff]
    %v230 = vld [vmem:[#allocation5 + $0x470] sm:$0xff]
    %v231 = vld [vmem:[#allocation5 + $0x478] sm:$0xff]
    %v232 = vld [vmem:[#allocation5 + $0x480] sm:$0xff]
    %v233 = vld [vmem:[#allocation5 + $0x488] sm:$0xff]
    %v234 = vld [vmem:[#allocation5 + $0x490] sm:$0xff]
    %v235 = vld [vmem:[#allocation5 + $0x498] sm:$0xff]
    %v236 = vld [vmem:[#allocation5 + $0x4a0] sm:$0xff]
    %v237 = vld [vmem:[#allocation5 + $0x4a8] sm:$0xff]
    %v238 = vld [vmem:[#allocation5 + $0x4b0] sm:$0xff]
    %v239 = vld [vmem:[#allocation5 + $0x4b8] sm:$0xff]
    %v240 = vld [vmem:[#allocation5 + $0x4c0] sm:$0xff]
    %v241 = vld [vmem:[#allocation5 + $0x4c8] sm:$0xff]
    %v242 = vld [vmem:[#allocation5 + $0x4d0] sm:$0xff]
    %v243 = vld [vmem:[#allocation5 + $0x4d8] sm:$0xff]
    %v244 = vld [vmem:[#allocation5 + $0x4e0] sm:$0xff]
    %v245 = vld [vmem:[#allocation5 + $0x4e8] sm:$0xff]
    %v246 = vld [vmem:[#allocation5 + $0x4f0] sm:$0xff]
    %v247 = vld [vmem:[#allocation5 + $0x4f8] sm:$0xff]
    %v248 = vld [vmem:[#allocation5 + $0x500] sm:$0xff]
    %v249 = vld [vmem:[#allocation5 + $0x508] sm:$0xff]
    %v250 = vld [vmem:[#allocation5 + $0x510] sm:$0xff]
    %v251 = vld [vmem:[#allocation5 + $0x518] sm:$0xff]
    %v252 = vld [vmem:[#allocation5 + $0x520] sm:$0xff]
    %v253 = vld [vmem:[#allocation5 + $0x528] sm:$0xff]
    %v254 = vld [vmem:[#allocation5 + $0x530] sm:$0xff]
    %v255 = vld [vmem:[#allocation5 + $0x538] sm:$0xff]
    %v256 = vld [vmem:[#allocation5 + $0x540] sm:$0xff]
    %v257 = vld [vmem:[#allocation5 + $0x548] sm:$0xff]
    %v258 = vld [vmem:[#allocation5 + $0x550] sm:$0xff]
    %v259 = vld [vmem:[#allocation5 + $0x558] sm:$0xff]
    %v260 = vld [vmem:[#allocation5 + $0x560] sm:$0xff]
    %v261 = vld [vmem:[#allocation5 + $0x568] sm:$0xff]
    %v262 = vld [vmem:[#allocation5 + $0x570] sm:$0xff]
    %v263 = vld [vmem:[#allocation5 + $0x578] sm:$0xff]
    %v264 = vld [vmem:[#allocation5 + $0x580] sm:$0xff]
    %v265 = vld [vmem:[#allocation5 + $0x588] sm:$0xff]
    %v266 = vld [vmem:[#allocation5 + $0x590] sm:$0xff]
    %v267 = vld [vmem:[#allocation5 + $0x598] sm:$0xff]
    %v268 = vld [vmem:[#allocation5 + $0x5a0] sm:$0xff]
    %v269 = vld [vmem:[#allocation5 + $0x5a8] sm:$0xff]
    %v270 = vld [vmem:[#allocation5 + $0x5b0] sm:$0xff]
    %v271 = vld [vmem:[#allocation5 + $0x5b8] sm:$0xff]
    %v272 = vld [vmem:[#allocation5 + $0x5c0] sm:$0xff]
    %v273 = vld [vmem:[#allocation5 + $0x5c8] sm:$0xff]
    %v274 = vld [vmem:[#allocation5 + $0x5d0] sm:$0xff]
    %v275 = vld [vmem:[#allocation5 + $0x5d8] sm:$0xff]
    %v276 = vld [vmem:[#allocation5 + $0x5e0] sm:$0xff]
    %v277 = vld [vmem:[#allocation5 + $0x5e8] sm:$0xff]
    %v278 = vld [vmem:[#allocation5 + $0x5f0] sm:$0xff]
    %v279 = vld [vmem:[#allocation5 + $0x5f8] sm:$0xff]
    %v280 = vld [vmem:[#allocation5 + $0x600] sm:$0xff]
    %v281 = vld [vmem:[#allocation5 + $0x608] sm:$0xff]
    %v282 = vld [vmem:[#allocation5 + $0x610] sm:$0xff]
    %v283 = vld [vmem:[#allocation5 + $0x618] sm:$0xff]
    %v284 = vld [vmem:[#allocation5 + $0x620] sm:$0xff]
    %v285 = vld [vmem:[#allocation5 + $0x628] sm:$0xff]
    %v286 = vld [vmem:[#allocation5 + $0x630] sm:$0xff]
    %v287 = vld [vmem:[#allocation5 + $0x638] sm:$0xff]
    %v288 = vld [vmem:[#allocation5 + $0x640] sm:$0xff]
    %v289 = vld [vmem:[#allocation5 + $0x648] sm:$0xff]
    %v290 = vld [vmem:[#allocation5 + $0x650] sm:$0xff]
    %v291 = vld [vmem:[#allocation5 + $0x658] sm:$0xff]
    %v292 = vld [vmem:[#allocation5 + $0x660] sm:$0xff]
    %v293 = vld [vmem:[#allocation5 + $0x668] sm:$0xff]
    %v294 = vld [vmem:[#allocation5 + $0x670] sm:$0xff]
    %v295 = vld [vmem:[#allocation5 + $0x678] sm:$0xff]
    %v296 = vld [vmem:[#allocation5 + $0x680] sm:$0xff]
    %v297 = vld [vmem:[#allocation5 + $0x688] sm:$0xff]
    %v298 = vld [vmem:[#allocation5 + $0x690] sm:$0xff]
    %v299 = vld [vmem:[#allocation5 + $0x698] sm:$0xff]
    %v300 = vld [vmem:[#allocation5 + $0x6a0] sm:$0xff]
    %v301 = vld [vmem:[#allocation5 + $0x6a8] sm:$0xff]
    %v302 = vld [vmem:[#allocation5 + $0x6b0] sm:$0xff]
    %v303 = vld [vmem:[#allocation5 + $0x6b8] sm:$0xff]
    %v304 = vld [vmem:[#allocation5 + $0x6c0] sm:$0xff]
    %v305 = vld [vmem:[#allocation5 + $0x6c8] sm:$0xff]
    %v306 = vld [vmem:[#allocation5 + $0x6d0] sm:$0xff]
    %v307 = vld [vmem:[#allocation5 + $0x6d8] sm:$0xff]
    %v308 = vld [vmem:[#allocation5 + $0x6e0] sm:$0xff]
    %v309 = vld [vmem:[#allocation5 + $0x6e8] sm:$0xff]
    %v310 = vld [vmem:[#allocation5 + $0x6f0] sm:$0xff]
    %v311 = vld [vmem:[#allocation5 + $0x6f8] sm:$0xff]
    %v312 = vld [vmem:[#allocation5 + $0x700] sm:$0xff]
    %v313 = vld [vmem:[#allocation5 + $0x708] sm:$0xff]
    %v314 = vld [vmem:[#allocation5 + $0x710] sm:$0xff]
    %v315 = vld [vmem:[#allocation5 + $0x718] sm:$0xff]
    %v316 = vld [vmem:[#allocation5 + $0x720] sm:$0xff]
    %v317 = vld [vmem:[#allocation5 + $0x728] sm:$0xff]
    %v318 = vld [vmem:[#allocation5 + $0x730] sm:$0xff]
    %v319 = vld [vmem:[#allocation5 + $0x738] sm:$0xff]
    %v320 = vld [vmem:[#allocation5 + $0x740] sm:$0xff]
    %v321 = vld [vmem:[#allocation5 + $0x748] sm:$0xff]
    %v322 = vld [vmem:[#allocation5 + $0x750] sm:$0xff]
    %v323 = vld [vmem:[#allocation5 + $0x758] sm:$0xff]
    %v324 = vld [vmem:[#allocation5 + $0x760] sm:$0xff]
    %v325 = vld [vmem:[#allocation5 + $0x768] sm:$0xff]
    %v326 = vld [vmem:[#allocation5 + $0x770] sm:$0xff]
    %v327 = vld [vmem:[#allocation5 + $0x778] sm:$0xff]
    %v328 = vld [vmem:[#allocation5 + $0x780] sm:$0xff]
    %v329 = vld [vmem:[#allocation5 + $0x788] sm:$0xff]
    %v330 = vld [vmem:[#allocation5 + $0x790] sm:$0xff]
    %v331 = vld [vmem:[#allocation5 + $0x798] sm:$0xff]
    %v332 = vld [vmem:[#allocation5 + $0x7a0] sm:$0xff]
    %v333 = vld [vmem:[#allocation5 + $0x7a8] sm:$0xff]
    %v334 = vld [vmem:[#allocation5 + $0x7b0] sm:$0xff]
    %v335 = vld [vmem:[#allocation5 + $0x7b8] sm:$0xff]
    %v336 = vld [vmem:[#allocation5 + $0x7c0] sm:$0xff]
    %v337 = vld [vmem:[#allocation5 + $0x7c8] sm:$0xff]
    %v338 = vld [vmem:[#allocation5 + $0x7d0] sm:$0xff]
    %v339 = vld [vmem:[#allocation5 + $0x7d8] sm:$0xff]
    %v340 = vld [vmem:[#allocation5 + $0x7e0] sm:$0xff]
    %v341 = vld [vmem:[#allocation5 + $0x7e8] sm:$0xff]
    %v342 = vld [vmem:[#allocation5 + $0x7f0] sm:$0xff]
    %v343 = vld [vmem:[#allocation5 + $0x7f8] sm:$0xff]
    %v344 = vld [vmem:[#allocation5 + $0x800] sm:$0xff]
    %v345 = vld [vmem:[#allocation5 + $0x808] sm:$0xff]
    %v346 = vld [vmem:[#allocation5 + $0x810] sm:$0xff]
    %v347 = vld [vmem:[#allocation5 + $0x818] sm:$0xff]
    %v348 = vld [vmem:[#allocation5 + $0x820] sm:$0xff]
    %v349 = vld [vmem:[#allocation5 + $0x828] sm:$0xff]
    %v350 = vld [vmem:[#allocation5 + $0x830] sm:$0xff]
    %v351 = vld [vmem:[#allocation5 + $0x838] sm:$0xff]
    %v352 = vld [vmem:[#allocation5 + $0x840] sm:$0xff]
    %v353 = vld [vmem:[#allocation5 + $0x848] sm:$0xff]
    %v354 = vld [vmem:[#allocation5 + $0x850] sm:$0xff]
    %v355 = vld [vmem:[#allocation5 + $0x858] sm:$0xff]
    %v356 = vld [vmem:[#allocation5 + $0x860] sm:$0xff]
    %v357 = vld [vmem:[#allocation5 + $0x868] sm:$0xff]
    %v358 = vld [vmem:[#allocation5 + $0x870] sm:$0xff]
    %v359 = vld [vmem:[#allocation5 + $0x878] sm:$0xff]
    %v360 = vld [vmem:[#allocation5 + $0x880] sm:$0xff]
    %v361 = vld [vmem:[#allocation5 + $0x888] sm:$0xff]
    %v362 = vld [vmem:[#allocation5 + $0x890] sm:$0xff]
    %v363 = vld [vmem:[#allocation5 + $0x898] sm:$0xff]
    %v364 = vld [vmem:[#allocation5 + $0x8a0] sm:$0xff]
    %v365 = vld [vmem:[#allocation5 + $0x8a8] sm:$0xff]
    %v366 = vld [vmem:[#allocation5 + $0x8b0] sm:$0xff]
    %v367 = vld [vmem:[#allocation5 + $0x8b8] sm:$0xff]
    %v368 = vld [vmem:[#allocation5 + $0x8c0] sm:$0xff]
    %v369 = vld [vmem:[#allocation5 + $0x8c8] sm:$0xff]
    %v370 = vld [vmem:[#allocation5 + $0x8d0] sm:$0xff]
    %v371 = vld [vmem:[#allocation5 + $0x8d8] sm:$0xff]
    %v372 = vld [vmem:[#allocation5 + $0x8e0] sm:$0xff]
    %v373 = vld [vmem:[#allocation5 + $0x8e8] sm:$0xff]
    %v374 = vld [vmem:[#allocation5 + $0x8f0] sm:$0xff]
    %v375 = vld [vmem:[#allocation5 + $0x8f8] sm:$0xff]
    %v376 = vld [vmem:[#allocation5 + $0x900] sm:$0xff]
    %v377 = vld [vmem:[#allocation5 + $0x908] sm:$0xff]
    %v378 = vld [vmem:[#allocation5 + $0x910] sm:$0xff]
    %v379 = vld [vmem:[#allocation5 + $0x918] sm:$0xff]
    %v380 = vld [vmem:[#allocation5 + $0x920] sm:$0xff]
    %v381 = vld [vmem:[#allocation5 + $0x928] sm:$0xff]
    %v382 = vld [vmem:[#allocation5 + $0x930] sm:$0xff]
    %v383 = vld [vmem:[#allocation5 + $0x938] sm:$0xff]
    %v384 = vld [vmem:[#allocation5 + $0x940] sm:$0xff]
    %v385 = vld [vmem:[#allocation5 + $0x948] sm:$0xff]
    %v386 = vld [vmem:[#allocation5 + $0x950] sm:$0xff]
    %v387 = vld [vmem:[#allocation5 + $0x958] sm:$0xff]
    %v388 = vld [vmem:[#allocation5 + $0x960] sm:$0xff]
    %v389 = vld [vmem:[#allocation5 + $0x968] sm:$0xff]
    %v390 = vld [vmem:[#allocation5 + $0x970] sm:$0xff]
    %v391 = vld [vmem:[#allocation5 + $0x978] sm:$0xff]
    %v392 = vld [vmem:[#allocation5 + $0x980] sm:$0xff]
    %v393 = vld [vmem:[#allocation5 + $0x988] sm:$0xff]
    %v394 = vld [vmem:[#allocation5 + $0x990] sm:$0xff]
    %v395 = vld [vmem:[#allocation5 + $0x998] sm:$0xff]
    %v396 = vld [vmem:[#allocation5 + $0x9a0] sm:$0xff]
    %v397 = vld [vmem:[#allocation5 + $0x9a8] sm:$0xff]
    %v398 = vld [vmem:[#allocation5 + $0x9b0] sm:$0xff]
    %v399 = vld [vmem:[#allocation5 + $0x9b8] sm:$0xff]
    %v400 = vld [vmem:[#allocation5 + $0x9c0] sm:$0xff]
    %v401 = vld [vmem:[#allocation5 + $0x9c8] sm:$0xff]
    %v402 = vld [vmem:[#allocation5 + $0x9d0] sm:$0xff]
    %v403 = vld [vmem:[#allocation5 + $0x9d8] sm:$0xff]
    %v404 = vld [vmem:[#allocation5 + $0x9e0] sm:$0xff]
    %v405 = vld [vmem:[#allocation5 + $0x9e8] sm:$0xff]
    %v406 = vld [vmem:[#allocation5 + $0x9f0] sm:$0xff]
    %v407 = vld [vmem:[#allocation5 + $0x9f8] sm:$0xff]
    %v408 = vld [vmem:[#allocation5 + $0xa00] sm:$0xff]
    %v409 = vld [vmem:[#allocation5 + $0xa08] sm:$0xff]
    %v410 = vld [vmem:[#allocation5 + $0xa10] sm:$0xff]
    %v411 = vld [vmem:[#allocation5 + $0xa18] sm:$0xff]
    %v412 = vld [vmem:[#allocation5 + $0xa20] sm:$0xff]
    %v413 = vld [vmem:[#allocation5 + $0xa28] sm:$0xff]
    %v414 = vld [vmem:[#allocation5 + $0xa30] sm:$0xff]
    %v415 = vld [vmem:[#allocation5 + $0xa38] sm:$0xff]
    %v416 = vld [vmem:[#allocation5 + $0xa40] sm:$0xff]
    %v417 = vld [vmem:[#allocation5 + $0xa48] sm:$0xff]
    %v418 = vld [vmem:[#allocation5 + $0xa50] sm:$0xff]
    %v419 = vld [vmem:[#allocation5 + $0xa58] sm:$0xff]
    %v420 = vld [vmem:[#allocation5 + $0xa60] sm:$0xff]
    %v421 = vld [vmem:[#allocation5 + $0xa68] sm:$0xff]
    %v422 = vld [vmem:[#allocation5 + $0xa70] sm:$0xff]
    %v423 = vld [vmem:[#allocation5 + $0xa78] sm:$0xff]
    %v424 = vld [vmem:[#allocation5 + $0xa80] sm:$0xff]
    %v425 = vld [vmem:[#allocation5 + $0xa88] sm:$0xff]
    %v426 = vld [vmem:[#allocation5 + $0xa90] sm:$0xff]
    %v427 = vld [vmem:[#allocation5 + $0xa98] sm:$0xff]
    %v428 = vld [vmem:[#allocation5 + $0xaa0] sm:$0xff]
    %v429 = vld [vmem:[#allocation5 + $0xaa8] sm:$0xff]
    %v430 = vld [vmem:[#allocation5 + $0xab0] sm:$0xff]
    %v431 = vld [vmem:[#allocation5 + $0xab8] sm:$0xff]
    %v432 = vld [vmem:[#allocation5 + $0xac0] sm:$0xff]
    %v433 = vld [vmem:[#allocation5 + $0xac8] sm:$0xff]
    %v434 = vld [vmem:[#allocation5 + $0xad0] sm:$0xff]
    %v435 = vld [vmem:[#allocation5 + $0xad8] sm:$0xff]
    %v436 = vld [vmem:[#allocation5 + $0xae0] sm:$0xff]
    %v437 = vld [vmem:[#allocation5 + $0xae8] sm:$0xff]
    %v438 = vld [vmem:[#allocation5 + $0xaf0] sm:$0xff]
    %v439 = vld [vmem:[#allocation5 + $0xaf8] sm:$0xff]
    %v440 = vld [vmem:[#allocation5 + $0xb00] sm:$0xff]
    %v441 = vld [vmem:[#allocation5 + $0xb08] sm:$0xff]
    %v442 = vld [vmem:[#allocation5 + $0xb10] sm:$0xff]
    %v443 = vld [vmem:[#allocation5 + $0xb18] sm:$0xff]
    %v444 = vld [vmem:[#allocation5 + $0xb20] sm:$0xff]
    %v445 = vld [vmem:[#allocation5 + $0xb28] sm:$0xff]
    %v446 = vld [vmem:[#allocation5 + $0xb30] sm:$0xff]
    %v447 = vld [vmem:[#allocation5 + $0xb38] sm:$0xff]
    %v448 = vld [vmem:[#allocation5 + $0xb40] sm:$0xff]
    %v449 = vld [vmem:[#allocation5 + $0xb48] sm:$0xff]
    %v450 = vld [vmem:[#allocation5 + $0xb50] sm:$0xff]
    %v451 = vld [vmem:[#allocation5 + $0xb58] sm:$0xff]
    %v452 = vld [vmem:[#allocation5 + $0xb60] sm:$0xff]
    %v453 = vld [vmem:[#allocation5 + $0xb68] sm:$0xff]
    %v454 = vld [vmem:[#allocation5 + $0xb70] sm:$0xff]
    %v455 = vld [vmem:[#allocation5 + $0xb78] sm:$0xff]
    %v456 = vld [vmem:[#allocation5 + $0xb80] sm:$0xff]
    %v457 = vld [vmem:[#allocation5 + $0xb88] sm:$0xff]
    %v458 = vld [vmem:[#allocation5 + $0xb90] sm:$0xff]
    %v459 = vld [vmem:[#allocation5 + $0xb98] sm:$0xff]
    %v460 = vld [vmem:[#allocation5 + $0xba0] sm:$0xff]
    %v461 = vld [vmem:[#allocation5 + $0xba8] sm:$0xff]
    %v462 = vld [vmem:[#allocation5 + $0xbb0] sm:$0xff]
    %v463 = vld [vmem:[#allocation5 + $0xbb8] sm:$0xff]
    %v464 = vld [vmem:[#allocation5 + $0xbc0] sm:$0xff]
    %v465 = vld [vmem:[#allocation5 + $0xbc8] sm:$0xff]
    %v466 = vld [vmem:[#allocation5 + $0xbd0] sm:$0xff]
    %v467 = vld [vmem:[#allocation5 + $0xbd8] sm:$0xff]
    %v468 = vld [vmem:[#allocation5 + $0xbe0] sm:$0xff]
    %v469 = vld [vmem:[#allocation5 + $0xbe8] sm:$0xff]
    %v470 = vld [vmem:[#allocation5 + $0xbf0] sm:$0xff]
    %v471 = vld [vmem:[#allocation5 + $0xbf8] sm:$0xff]
    %v472 = vld [vmem:[#allocation5 + $0xc00] sm:$0xff]
    %v473 = vld [vmem:[#allocation5 + $0xc08] sm:$0xff]
    %v474 = vld [vmem:[#allocation5 + $0xc10] sm:$0xff]
    %v475 = vld [vmem:[#allocation5 + $0xc18] sm:$0xff]
    %v476 = vld [vmem:[#allocation5 + $0xc20] sm:$0xff]
    %v477 = vld [vmem:[#allocation5 + $0xc28] sm:$0xff]
    %v478 = vld [vmem:[#allocation5 + $0xc30] sm:$0xff]
    %v479 = vld [vmem:[#allocation5 + $0xc38] sm:$0xff]
    %v480 = vld [vmem:[#allocation5 + $0xc40] sm:$0xff]
    %v481 = vld [vmem:[#allocation5 + $0xc48] sm:$0xff]
    %v482 = vld [vmem:[#allocation5 + $0xc50] sm:$0xff]
    %v483 = vld [vmem:[#allocation5 + $0xc58] sm:$0xff]
    %v484 = vld [vmem:[#allocation5 + $0xc60] sm:$0xff]
    %v485 = vld [vmem:[#allocation5 + $0xc68] sm:$0xff]
    %v486 = vld [vmem:[#allocation5 + $0xc70] sm:$0xff]
    %v487 = vld [vmem:[#allocation5 + $0xc78] sm:$0xff]
    %v488 = vld [vmem:[#allocation5 + $0xc80] sm:$0xff]
    %v489 = vld [vmem:[#allocation5 + $0xc88] sm:$0xff]
    %v490 = vld [vmem:[#allocation5 + $0xc90] sm:$0xff]
    %v491 = vld [vmem:[#allocation5 + $0xc98] sm:$0xff]
    %v492 = vld [vmem:[#allocation5 + $0xca0] sm:$0xff]
    %v493 = vld [vmem:[#allocation5 + $0xca8] sm:$0xff]
    %v494 = vld [vmem:[#allocation5 + $0xcb0] sm:$0xff]
    %v495 = vld [vmem:[#allocation5 + $0xcb8] sm:$0xff]
    %v496 = vld [vmem:[#allocation5 + $0xcc0] sm:$0xff]
    %v497 = vld [vmem:[#allocation5 + $0xcc8] sm:$0xff]
    %v498 = vld [vmem:[#allocation5 + $0xcd0] sm:$0xff]
    %v499 = vld [vmem:[#allocation5 + $0xcd8] sm:$0xff]
    %v500 = vld [vmem:[#allocation5 + $0xce0] sm:$0xff]
    %v501 = vld [vmem:[#allocation5 + $0xce8] sm:$0xff]
    %v502 = vld [vmem:[#allocation5 + $0xcf0] sm:$0xff]
    %v503 = vld [vmem:[#allocation5 + $0xcf8] sm:$0xff]
    %v504 = vld [vmem:[#allocation5 + $0xd00] sm:$0xff]
    %v505 = vld [vmem:[#allocation5 + $0xd08] sm:$0xff]
    %v506 = vld [vmem:[#allocation5 + $0xd10] sm:$0xff]
    %v507 = vld [vmem:[#allocation5 + $0xd18] sm:$0xff]
    %v508 = vld [vmem:[#allocation5 + $0xd20] sm:$0xff]
    %v509 = vld [vmem:[#allocation5 + $0xd28] sm:$0xff]
    %v510 = vld [vmem:[#allocation5 + $0xd30] sm:$0xff]
    %v511 = vld [vmem:[#allocation5 + $0xd38] sm:$0xff]
    %v512 = vld [vmem:[#allocation5 + $0xd40] sm:$0xff]
    %v513 = vld [vmem:[#allocation5 + $0xd48] sm:$0xff]
    %v514 = vld [vmem:[#allocation5 + $0xd50] sm:$0xff]
    %v515 = vld [vmem:[#allocation5 + $0xd58] sm:$0xff]
    %v516 = vld [vmem:[#allocation5 + $0xd60] sm:$0xff]
    %v517 = vld [vmem:[#allocation5 + $0xd68] sm:$0xff]
    %v518 = vld [vmem:[#allocation5 + $0xd70] sm:$0xff]
    %v519 = vld [vmem:[#allocation5 + $0xd78] sm:$0xff]
    %v520 = vld [vmem:[#allocation5 + $0xd80] sm:$0xff]
    %v521 = vld [vmem:[#allocation5 + $0xd88] sm:$0xff]
    %v522 = vld [vmem:[#allocation5 + $0xd90] sm:$0xff]
    %v523 = vld [vmem:[#allocation5 + $0xd98] sm:$0xff]
    %v524 = vld [vmem:[#allocation5 + $0xda0] sm:$0xff]
    %v525 = vld [vmem:[#allocation5 + $0xda8] sm:$0xff]
    %v526 = vld [vmem:[#allocation5 + $0xdb0] sm:$0xff]
    %v527 = vld [vmem:[#allocation5 + $0xdb8] sm:$0xff]
    %v528 = vld [vmem:[#allocation5 + $0xdc0] sm:$0xff]
    %v529 = vld [vmem:[#allocation5 + $0xdc8] sm:$0xff]
    %v530 = vld [vmem:[#allocation5 + $0xdd0] sm:$0xff]
    %v531 = vld [vmem:[#allocation5 + $0xdd8] sm:$0xff]
    %v532 = vld [vmem:[#allocation5 + $0xde0] sm:$0xff]
    %v533 = vld [vmem:[#allocation5 + $0xde8] sm:$0xff]
    %v534 = vld [vmem:[#allocation5 + $0xdf0] sm:$0xff]
    %v535 = vld [vmem:[#allocation5 + $0xdf8] sm:$0xff]
    %v536 = vld [vmem:[#allocation5 + $0xe00] sm:$0xff]
    %v537 = vld [vmem:[#allocation5 + $0xe08] sm:$0xff]
    %v538 = vld [vmem:[#allocation5 + $0xe10] sm:$0xff]
    %v539 = vld [vmem:[#allocation5 + $0xe18] sm:$0xff]
    %v540 = vld [vmem:[#allocation5 + $0xe20] sm:$0xff]
    %v541 = vld [vmem:[#allocation5 + $0xe28] sm:$0xff]
    %v542 = vld [vmem:[#allocation5 + $0xe30] sm:$0xff]
    %v543 = vld [vmem:[#allocation5 + $0xe38] sm:$0xff]
    %v544 = vld [vmem:[#allocation5 + $0xe40] sm:$0xff]
    %v545 = vld [vmem:[#allocation5 + $0xe48] sm:$0xff]
    %v546 = vld [vmem:[#allocation5 + $0xe50] sm:$0xff]
    %v547 = vld [vmem:[#allocation5 + $0xe58] sm:$0xff]
    %v548 = vld [vmem:[#allocation5 + $0xe60] sm:$0xff]
    %v549 = vld [vmem:[#allocation5 + $0xe68] sm:$0xff]
    %v550 = vld [vmem:[#allocation5 + $0xe70] sm:$0xff]
    %v551 = vld [vmem:[#allocation5 + $0xe78] sm:$0xff]
    %v552 = vld [vmem:[#allocation5 + $0xe80] sm:$0xff]
    %v553 = vld [vmem:[#allocation5 + $0xe88] sm:$0xff]
    %v554 = vld [vmem:[#allocation5 + $0xe90] sm:$0xff]
    %v555 = vld [vmem:[#allocation5 + $0xe98] sm:$0xff]
    %v556 = vld [vmem:[#allocation5 + $0xea0] sm:$0xff]
    %v557 = vld [vmem:[#allocation5 + $0xea8] sm:$0xff]
    %v558 = vld [vmem:[#allocation5 + $0xeb0] sm:$0xff]
    %v559 = vld [vmem:[#allocation5 + $0xeb8] sm:$0xff]
    %v560 = vld [vmem:[#allocation5 + $0xec0] sm:$0xff]
    %v561 = vld [vmem:[#allocation5 + $0xec8] sm:$0xff]
    %v562 = vld [vmem:[#allocation5 + $0xed0] sm:$0xff]
    %v563 = vld [vmem:[#allocation5 + $0xed8] sm:$0xff]
    %v564 = vld [vmem:[#allocation5 + $0xee0] sm:$0xff]
    %v565 = vld [vmem:[#allocation5 + $0xee8] sm:$0xff]
    %v566 = vld [vmem:[#allocation5 + $0xef0] sm:$0xff]
    %v567 = vld [vmem:[#allocation5 + $0xef8] sm:$0xff]
    %v568 = vld [vmem:[#allocation5 + $0xf00] sm:$0xff]
    %v569 = vld [vmem:[#allocation5 + $0xf08] sm:$0xff]
    %v570 = vld [vmem:[#allocation5 + $0xf10] sm:$0xff]
    %v571 = vld [vmem:[#allocation5 + $0xf18] sm:$0xff]
    %v572 = vld [vmem:[#allocation5 + $0xf20] sm:$0xff]
    %v573 = vld [vmem:[#allocation5 + $0xf28] sm:$0xff]
    %v574 = vld [vmem:[#allocation5 + $0xf30] sm:$0xff]
    %v575 = vld [vmem:[#allocation5 + $0xf38] sm:$0xff]
    %v576 = vld [vmem:[#allocation5 + $0xf40] sm:$0xff]
    %v577 = vld [vmem:[#allocation5 + $0xf48] sm:$0xff]
    %v578 = vld [vmem:[#allocation5 + $0xf50] sm:$0xff]
    %v579 = vld [vmem:[#allocation5 + $0xf58] sm:$0xff]
    %v580 = vld [vmem:[#allocation5 + $0xf60] sm:$0xff]
    %v581 = vld [vmem:[#allocation5 + $0xf68] sm:$0xff]
    %v582 = vld [vmem:[#allocation5 + $0xf70] sm:$0xff]
    %v583 = vld [vmem:[#allocation5 + $0xf78] sm:$0xff]
    %v584 = vld [vmem:[#allocation5 + $0xf80] sm:$0xff]
    %v585 = vld [vmem:[#allocation5 + $0xf88] sm:$0xff]
    %v586 = vld [vmem:[#allocation5 + $0xf90] sm:$0xff]
    %v587 = vld [vmem:[#allocation5 + $0xf98] sm:$0xff]
    %v588 = vld [vmem:[#allocation5 + $0xfa0] sm:$0xff]
    %v589 = vld [vmem:[#allocation5 + $0xfa8] sm:$0xff]
    %v590 = vld [vmem:[#allocation5 + $0xfb0] sm:$0xff]
    %v591 = vld [vmem:[#allocation5 + $0xfb8] sm:$0xff]
    %v592 = vld [vmem:[#allocation5 + $0xfc0] sm:$0xff]
    %v593 = vld [vmem:[#allocation5 + $0xfc8] sm:$0xff]
    %v594 = vld [vmem:[#allocation5 + $0xfd0] sm:$0xff]
    %v595 = vld [vmem:[#allocation5 + $0xfd8] sm:$0xff]
    %v596 = vld [vmem:[#allocation5 + $0xfe0] sm:$0xff]
    %v597 = vld [vmem:[#allocation5 + $0xfe8] sm:$0xff]
    %v598 = vld [vmem:[#allocation5 + $0xff0] sm:$0xff]
    %v599 = vld [vmem:[#allocation5 + $0xff8] sm:$0xff]
    %v600 = vld [vmem:[#allocation5 + $0x1000] sm:$0xff]
    %v601 = vld [vmem:[#allocation5 + $0x1008] sm:$0xff]
    %v602 = vld [vmem:[#allocation5 + $0x1010] sm:$0xff]
    %v603 = vld [vmem:[#allocation5 + $0x1018] sm:$0xff]
    %v604 = vld [vmem:[#allocation5 + $0x1020] sm:$0xff]
    %v605 = vld [vmem:[#allocation5 + $0x1028] sm:$0xff]
    %v606 = vld [vmem:[#allocation5 + $0x1030] sm:$0xff]
    %v607 = vld [vmem:[#allocation5 + $0x1038] sm:$0xff]
    %v608 = vld [vmem:[#allocation5 + $0x1040] sm:$0xff]
    %v609 = vld [vmem:[#allocation5 + $0x1048] sm:$0xff]
    %v610 = vld [vmem:[#allocation5 + $0x1050] sm:$0xff]
    %v611 = vld [vmem:[#allocation5 + $0x1058] sm:$0xff]
    %v612 = vld [vmem:[#allocation5 + $0x1060] sm:$0xff]
    %v613 = vld [vmem:[#allocation5 + $0x1068] sm:$0xff]
    %v614 = vld [vmem:[#allocation5 + $0x1070] sm:$0xff]
    %v615 = vld [vmem:[#allocation5 + $0x1078] sm:$0xff]
    %v616 = vld [vmem:[#allocation5 + $0x1080] sm:$0xff]
    %v617 = vld [vmem:[#allocation5 + $0x1088] sm:$0xff]
    %v618 = vld [vmem:[#allocation5 + $0x1090] sm:$0xff]
    %v619 = vld [vmem:[#allocation5 + $0x1098] sm:$0xff]
    %v620 = vld [vmem:[#allocation5 + $0x10a0] sm:$0xff]
    %v621 = vld [vmem:[#allocation5 + $0x10a8] sm:$0xff]
    %v622 = vld [vmem:[#allocation5 + $0x10b0] sm:$0xff]
    %v623 = vld [vmem:[#allocation5 + $0x10b8] sm:$0xff]
    %v624 = vld [vmem:[#allocation5 + $0x10c0] sm:$0xff]
    %v625 = vld [vmem:[#allocation5 + $0x10c8] sm:$0xff]
    %v626 = vld [vmem:[#allocation5 + $0x10d0] sm:$0xff]
    %v627 = vld [vmem:[#allocation5 + $0x10d8] sm:$0xff]
    %v628 = vld [vmem:[#allocation5 + $0x10e0] sm:$0xff]
    %v629 = vld [vmem:[#allocation5 + $0x10e8] sm:$0xff]
    %v630 = vld [vmem:[#allocation5 + $0x10f0] sm:$0xff]
    %v631 = vld [vmem:[#allocation5 + $0x10f8] sm:$0xff]
    %v632 = vld [vmem:[#allocation5 + $0x1100] sm:$0xff]
    %v633 = vld [vmem:[#allocation5 + $0x1108] sm:$0xff]
    %v634 = vld [vmem:[#allocation5 + $0x1110] sm:$0xff]
    %v635 = vld [vmem:[#allocation5 + $0x1118] sm:$0xff]
    %v636 = vld [vmem:[#allocation5 + $0x1120] sm:$0xff]
    %v637 = vld [vmem:[#allocation5 + $0x1128] sm:$0xff]
    %v638 = vld [vmem:[#allocation5 + $0x1130] sm:$0xff]
    %v639 = vld [vmem:[#allocation5 + $0x1138] sm:$0xff]
    %v640 = vld [vmem:[#allocation5 + $0x1140] sm:$0xff]
    %v641 = vld [vmem:[#allocation5 + $0x1148] sm:$0xff]
    %v642 = vld [vmem:[#allocation5 + $0x1150] sm:$0xff]
    %v643 = vld [vmem:[#allocation5 + $0x1158] sm:$0xff]
    %v644 = vld [vmem:[#allocation5 + $0x1160] sm:$0xff]
    %v645 = vld [vmem:[#allocation5 + $0x1168] sm:$0xff]
    %v646 = vld [vmem:[#allocation5 + $0x1170] sm:$0xff]
    %v647 = vld [vmem:[#allocation5 + $0x1178] sm:$0xff]
    %v648 = vld [vmem:[#allocation5 + $0x1180] sm:$0xff]
    %v649 = vld [vmem:[#allocation5 + $0x1188] sm:$0xff]
    %v650 = vld [vmem:[#allocation5 + $0x1190] sm:$0xff]
    %v651 = vld [vmem:[#allocation5 + $0x1198] sm:$0xff]
    %v652 = vld [vmem:[#allocation5 + $0x11a0] sm:$0xff]
    %v653 = vld [vmem:[#allocation5 + $0x11a8] sm:$0xff]
    %v654 = vld [vmem:[#allocation5 + $0x11b0] sm:$0xff]
    %v655 = vld [vmem:[#allocation5 + $0x11b8] sm:$0xff]
    %v656 = vld [vmem:[#allocation5 + $0x11c0] sm:$0xff]
    %v657 = vld [vmem:[#allocation5 + $0x11c8] sm:$0xff]
    %v658 = vld [vmem:[#allocation5 + $0x11d0] sm:$0xff]
    %v659 = vld [vmem:[#allocation5 + $0x11d8] sm:$0xff]
    %v660 = vld [vmem:[#allocation5 + $0x11e0] sm:$0xff]
    %v661 = vld [vmem:[#allocation5 + $0x11e8] sm:$0xff]
    %v662 = vld [vmem:[#allocation5 + $0x11f0] sm:$0xff]
    %v663 = vld [vmem:[#allocation5 + $0x11f8] sm:$0xff]
    %v664 = vld [vmem:[#allocation5 + $0x1200] sm:$0xff]
    %v665 = vld [vmem:[#allocation5 + $0x1208] sm:$0xff]
    %v666 = vld [vmem:[#allocation5 + $0x1210] sm:$0xff]
    %v667 = vld [vmem:[#allocation5 + $0x1218] sm:$0xff]
    %v668 = vld [vmem:[#allocation5 + $0x1220] sm:$0xff]
    %v669 = vld [vmem:[#allocation5 + $0x1228] sm:$0xff]
    %v670 = vld [vmem:[#allocation5 + $0x1230] sm:$0xff]
    %v671 = vld [vmem:[#allocation5 + $0x1238] sm:$0xff]
    %v672 = vld [vmem:[#allocation5 + $0x1240] sm:$0xff]
    %v673 = vld [vmem:[#allocation5 + $0x1248] sm:$0xff]
    %v674 = vld [vmem:[#allocation5 + $0x1250] sm:$0xff]
    %v675 = vld [vmem:[#allocation5 + $0x1258] sm:$0xff]
    %v676 = vld [vmem:[#allocation5 + $0x1260] sm:$0xff]
    %v677 = vld [vmem:[#allocation5 + $0x1268] sm:$0xff]
    %v678 = vld [vmem:[#allocation5 + $0x1270] sm:$0xff]
    %v679 = vld [vmem:[#allocation5 + $0x1278] sm:$0xff]
    %v680 = vld [vmem:[#allocation5 + $0x1280] sm:$0xff]
    %v681 = vld [vmem:[#allocation5 + $0x1288] sm:$0xff]
    %v682 = vld [vmem:[#allocation5 + $0x1290] sm:$0xff]
    %v683 = vld [vmem:[#allocation5 + $0x1298] sm:$0xff]
    %v684 = vld [vmem:[#allocation5 + $0x12a0] sm:$0xff]
    %v685 = vld [vmem:[#allocation5 + $0x12a8] sm:$0xff]
    %v686 = vld [vmem:[#allocation5 + $0x12b0] sm:$0xff]
    %v687 = vld [vmem:[#allocation5 + $0x12b8] sm:$0xff]
    %v688 = vld [vmem:[#allocation5 + $0x12c0] sm:$0xff]
    %v689 = vld [vmem:[#allocation5 + $0x12c8] sm:$0xff]
    %v690 = vld [vmem:[#allocation5 + $0x12d0] sm:$0xff]
    %v691 = vld [vmem:[#allocation5 + $0x12d8] sm:$0xff]
    %v692 = vld [vmem:[#allocation5 + $0x12e0] sm:$0xff]
    %v693 = vld [vmem:[#allocation5 + $0x12e8] sm:$0xff]
    %v694 = vld [vmem:[#allocation5 + $0x12f0] sm:$0xff]
    %v695 = vld [vmem:[#allocation5 + $0x12f8] sm:$0xff]
    %v696 = vld [vmem:[#allocation5 + $0x1300] sm:$0xff]
    %v697 = vld [vmem:[#allocation5 + $0x1308] sm:$0xff]
    %v698 = vld [vmem:[#allocation5 + $0x1310] sm:$0xff]
    %v699 = vld [vmem:[#allocation5 + $0x1318] sm:$0xff]
    %v700 = vld [vmem:[#allocation5 + $0x1320] sm:$0xff]
    %v701 = vld [vmem:[#allocation5 + $0x1328] sm:$0xff]
    %v702 = vld [vmem:[#allocation5 + $0x1330] sm:$0xff]
    %v703 = vld [vmem:[#allocation5 + $0x1338] sm:$0xff]
    %v704 = vld [vmem:[#allocation5 + $0x1340] sm:$0xff]
    %v705 = vld [vmem:[#allocation5 + $0x1348] sm:$0xff]
    %v706 = vld [vmem:[#allocation5 + $0x1350] sm:$0xff]
    %v707 = vld [vmem:[#allocation5 + $0x1358] sm:$0xff]
    %v708 = vld [vmem:[#allocation5 + $0x1360] sm:$0xff]
    %v709 = vld [vmem:[#allocation5 + $0x1368] sm:$0xff]
    %v710 = vld [vmem:[#allocation5 + $0x1370] sm:$0xff]
    %v711 = vld [vmem:[#allocation5 + $0x1378] sm:$0xff]
    %v712 = vld [vmem:[#allocation5 + $0x1380] sm:$0xff]
    %v713 = vld [vmem:[#allocation5 + $0x1388] sm:$0xff]
    %v714 = vld [vmem:[#allocation5 + $0x1390] sm:$0xff]
    %v715 = vld [vmem:[#allocation5 + $0x1398] sm:$0xff]
    %v716 = vld [vmem:[#allocation5 + $0x13a0] sm:$0xff]
    %v717 = vld [vmem:[#allocation5 + $0x13a8] sm:$0xff]
    %v718 = vld [vmem:[#allocation5 + $0x13b0] sm:$0xff]
    %v719 = vld [vmem:[#allocation5 + $0x13b8] sm:$0xff]
    %v720 = vld [vmem:[#allocation5 + $0x13c0] sm:$0xff]
    %v721 = vld [vmem:[#allocation5 + $0x13c8] sm:$0xff]
    %v722 = vld [vmem:[#allocation5 + $0x13d0] sm:$0xff]
    %v723 = vld [vmem:[#allocation5 + $0x13d8] sm:$0xff]
    %v724 = vld [vmem:[#allocation5 + $0x13e0] sm:$0xff]
    %v725 = vld [vmem:[#allocation5 + $0x13e8] sm:$0xff]
    %v726 = vld [vmem:[#allocation5 + $0x13f0] sm:$0xff]
    %v727 = vld [vmem:[#allocation5 + $0x13f8] sm:$0xff]
    %v728 = vld [vmem:[#allocation7] sm:$0xff]
    %v730 = vlaneseq
    %v731 = vshrl.u32 %v730, 7
    %v732 = vsub.s32 0, %v731
    %v733 = vrot.slane %v728, %v732
    %v734 = vlaneseq
    %v735 = vshrl.u32 %v734, 7
    %v736 = vsub.s32 1, %v735
    %v737 = vrot.slane %v728, %v736
    %v738 = vlaneseq
    %v739 = vshrl.u32 %v738, 7
    %v740 = vsub.s32 2, %v739
    %v741 = vrot.slane %v728, %v740
    %v742 = vlaneseq
    %v743 = vshrl.u32 %v742, 7
    %v744 = vsub.s32 3, %v743
    %v745 = vrot.slane %v728, %v744
    %v746 = vlaneseq
    %v747 = vshrl.u32 %v746, 7
    %v748 = vsub.s32 4, %v747
    %v749 = vrot.slane %v728, %v748
    %v750 = vlaneseq
    %v751 = vshrl.u32 %v750, 7
    %v752 = vsub.s32 5, %v751
    %v753 = vrot.slane %v728, %v752
    %v754 = vlaneseq
    %v755 = vshrl.u32 %v754, 7
    %v756 = vsub.s32 6, %v755
    %v757 = vrot.slane %v728, %v756
    %v758 = vlaneseq
    %v759 = vshrl.u32 %v758, 7
    %v760 = vsub.s32 7, %v759
    %v761 = vrot.slane %v728, %v760
    %770 = vmatprep.subr.mxu0 %v209
    %771 = vmatpush1.msra.mxu0 %v208
    %772 = vmatprep.subr.mxu0 %v201
    %773 = vmatpush1.msra.mxu0 %v200
    %774 = vmatprep.subr.mxu0 %v193
    %775 = vmatpush1.msra.mxu0 %v192
    %776 = vmatprep.subr.mxu0 %v185
    %777 = vmatpush1.msra.mxu0 %v184
    %778 = vmatprep.subr.mxu0 %v177
    %779 = vmatpush1.msra.mxu0 %v176
    %780 = vmatprep.subr.mxu0 %v169
    %781 = vmatpush1.msra.mxu0 %v168
    %782 = vmatprep.subr.mxu0 %v161
    %783 = vmatpush1.msra.mxu0 %v160
    %784 = vmatprep.subr.mxu0 %v153
    %785 = vmatpush1.msra.mxu0 %v152
    %786 = vmatprep.subr.mxu0 %v145
    %787 = vmatpush1.msra.mxu0 %v144
    %788 = vmatprep.subr.mxu0 %v137
    %789 = vmatpush1.msra.mxu0 %v136
    %790 = vmatprep.subr.mxu0 %v129
    %791 = vmatpush1.msra.mxu0 %v128
    %792 = vmatprep.subr.mxu0 %v121
    %793 = vmatpush1.msra.mxu0 %v120
    %794 = vmatprep.subr.mxu0 %v113
    %795 = vmatpush1.msra.mxu0 %v112
    %796 = vmatprep.subr.mxu0 %v105
    %797 = vmatpush1.msra.mxu0 %v104
    %798 = vmatprep.subr.mxu0 %v97
    %799 = vmatpush1.msra.mxu0 %v96
    %800 = vmatprep.subr.mxu0 %v89
    %801 = vmatpush1.msra.mxu0 %v88
    %802 = vmatprep.subr.mxu0 %v337
    %803 = vmatpush2.msra.mxu0 %v336
    %804 = vmatprep.subr.mxu0 %v329
    %805 = vmatpush2.msra.mxu0 %v328
    %806 = vmatprep.subr.mxu0 %v321
    %807 = vmatpush2.msra.mxu0 %v320
    %808 = vmatprep.subr.mxu0 %v313
    %809 = vmatpush2.msra.mxu0 %v312
    %810 = vmatprep.subr.mxu0 %v305
    %811 = vmatpush2.msra.mxu0 %v304
    %812 = vmatprep.subr.mxu0 %v297
    %813 = vmatpush2.msra.mxu0 %v296
    %814 = vmatprep.subr.mxu0 %v289
    %815 = vmatpush2.msra.mxu0 %v288
    %816 = vmatprep.subr.mxu0 %v281
    %817 = vmatpush2.msra.mxu0 %v280
    %818 = vmatprep.subr.mxu0 %v273
    %819 = vmatpush2.msra.mxu0 %v272
    %820 = vmatprep.subr.mxu0 %v265
    %821 = vmatpush2.msra.mxu0 %v264
    %822 = vmatprep.subr.mxu0 %v257
    %823 = vmatpush2.msra.mxu0 %v256
    %824 = vmatprep.subr.mxu0 %v249
    %825 = vmatpush2.msra.mxu0 %v248
    %826 = vmatprep.subr.mxu0 %v241
    %827 = vmatpush2.msra.mxu0 %v240
    %828 = vmatprep.subr.mxu0 %v233
    %829 = vmatpush2.msra.mxu0 %v232
    %830 = vmatprep.subr.mxu0 %v225
    %831 = vmatpush2.msra.mxu0 %v224
    %832 = vmatprep.subr.mxu0 %v217
    %833 = vmatpush2.msra.mxu0 %v216
    %834 = vmatprep.mubr.f32.mxu0 %v84
    %835 = vmatmul.mubr.f32.gmra.mxu0 %v83
    %v836 = vpop.f32.mrf.mxu0
    %v837 = vadd.f32 %v733, %v836
    %v838 = vpop.f32.mrf.mxu0
    %v839 = vadd.f32 %v737, %v838
    %840 = vdwg.mxu0
    %841 = vmatprep.subr.mxu0 %v465
    %842 = vmatpush1.msra.mxu0 %v464
    %843 = vmatprep.subr.mxu0 %v457
    %844 = vmatpush1.msra.mxu0 %v456
    %845 = vmatprep.subr.mxu0 %v449
    %846 = vmatpush1.msra.mxu0 %v448
    %847 = vmatprep.subr.mxu0 %v441
    %848 = vmatpush1.msra.mxu0 %v440
    %849 = vmatprep.subr.mxu0 %v433
    %850 = vmatpush1.msra.mxu0 %v432
    %851 = vmatprep.subr.mxu0 %v425
    %852 = vmatpush1.msra.mxu0 %v424
    %853 = vmatprep.subr.mxu0 %v417
    %854 = vmatpush1.msra.mxu0 %v416
    %855 = vmatprep.subr.mxu0 %v409
    %856 = vmatpush1.msra.mxu0 %v408
    %857 = vmatprep.subr.mxu0 %v401
    %858 = vmatpush1.msra.mxu0 %v400
    %859 = vmatprep.subr.mxu0 %v393
    %860 = vmatpush1.msra.mxu0 %v392
    %861 = vmatprep.subr.mxu0 %v385
    %862 = vmatpush1.msra.mxu0 %v384
    %863 = vmatprep.subr.mxu0 %v377
    %864 = vmatpush1.msra.mxu0 %v376
    %865 = vmatprep.subr.mxu0 %v369
    %866 = vmatpush1.msra.mxu0 %v368
    %867 = vmatprep.subr.mxu0 %v361
    %868 = vmatpush1.msra.mxu0 %v360
    %869 = vmatprep.subr.mxu0 %v353
    %870 = vmatpush1.msra.mxu0 %v352
    %871 = vmatprep.subr.mxu0 %v345
    %872 = vmatpush1.msra.mxu0 %v344
    %873 = vmatprep.subr.mxu0 %v593
    %874 = vmatpush2.msra.mxu0 %v592
    %875 = vmatprep.subr.mxu0 %v585
    %876 = vmatpush2.msra.mxu0 %v584
    %877 = vmatprep.subr.mxu0 %v577
    %878 = vmatpush2.msra.mxu0 %v576
    %879 = vmatprep.subr.mxu0 %v569
    %880 = vmatpush2.msra.mxu0 %v568
    %881 = vmatprep.subr.mxu0 %v561
    %882 = vmatpush2.msra.mxu0 %v560
    %883 = vmatprep.subr.mxu0 %v553
    %884 = vmatpush2.msra.mxu0 %v552
    %885 = vmatprep.subr.mxu0 %v545
    %886 = vmatpush2.msra.mxu0 %v544
    %887 = vmatprep.subr.mxu0 %v537
    %888 = vmatpush2.msra.mxu0 %v536
    %889 = vmatprep.subr.mxu0 %v529
    %890 = vmatpush2.msra.mxu0 %v528
    %891 = vmatprep.subr.mxu0 %v521
    %892 = vmatpush2.msra.mxu0 %v520
    %893 = vmatprep.subr.mxu0 %v513
    %894 = vmatpush2.msra.mxu0 %v512
    %895 = vmatprep.subr.mxu0 %v505
    %896 = vmatpush2.msra.mxu0 %v504
    %897 = vmatprep.subr.mxu0 %v497
    %898 = vmatpush2.msra.mxu0 %v496
    %899 = vmatprep.subr.mxu0 %v489
    %900 = vmatpush2.msra.mxu0 %v488
    %901 = vmatprep.subr.mxu0 %v481
    %902 = vmatpush2.msra.mxu0 %v480
    %903 = vmatprep.subr.mxu0 %v473
    %904 = vmatpush2.msra.mxu0 %v472
    %905 = vmatprep.mubr.f32.mxu0 %v86
    %906 = vmatmul.mubr.f32.gmra.mxu0 %v85
    %v907 = vpop.f32.mrf.mxu0
    %v908 = vadd.f32 %v837, %v907
    %v909 = vpop.f32.mrf.mxu0
    %v910 = vadd.f32 %v839, %v909
    %911 = vdwg.mxu0
    %912 = vmatprep.subr.mxu0 %v721
    %913 = vmatpush1.msra.mxu0 %v720
    %914 = vmatprep.subr.mxu0 %v713
    %915 = vmatpush1.msra.mxu0 %v712
    %916 = vmatprep.subr.mxu0 %v705
    %917 = vmatpush1.msra.mxu0 %v704
    %918 = vmatprep.subr.mxu0 %v697
    %919 = vmatpush1.msra.mxu0 %v696
    %920 = vmatprep.subr.mxu0 %v689
    %921 = vmatpush1.msra.mxu0 %v688
    %922 = vmatprep.subr.mxu0 %v681
    %923 = vmatpush1.msra.mxu0 %v680
    %924 = vmatprep.subr.mxu0 %v673
    %925 = vmatpush1.msra.mxu0 %v672
    %926 = vmatprep.subr.mxu0 %v665
    %927 = vmatpush1.msra.mxu0 %v664
    %928 = vmatprep.subr.mxu0 %v657
    %929 = vmatpush1.msra.mxu0 %v656
    %930 = vmatprep.subr.mxu0 %v649
    %931 = vmatpush1.msra.mxu0 %v648
    %932 = vmatprep.subr.mxu0 %v641
    %933 = vmatpush1.msra.mxu0 %v640
    %934 = vmatprep.subr.mxu0 %v633
    %935 = vmatpush1.msra.mxu0 %v632
    %936 = vmatprep.subr.mxu0 %v625
    %937 = vmatpush1.msra.mxu0 %v624
    %938 = vmatprep.subr.mxu0 %v617
    %939 = vmatpush1.msra.mxu0 %v616
    %940 = vmatprep.subr.mxu0 %v609
    %941 = vmatpush1.msra.mxu0 %v608
    %942 = vmatprep.subr.mxu0 %v601
    %943 = vmatpush1.msra.mxu0 %v600
    %944 = vmatprep.subr.mxu0 0.0
    %945 = vmatpush2.msra.mxu0 0.0
    %946 = vmatprep.subr.mxu0 0.0
    %947 = vmatpush2.msra.mxu0 0.0
    %948 = vmatprep.subr.mxu0 0.0
    %949 = vmatpush2.msra.mxu0 0.0
    %950 = vmatprep.subr.mxu0 0.0
    %951 = vmatpush2.msra.mxu0 0.0
    %952 = vmatprep.subr.mxu0 0.0
    %953 = vmatpush2.msra.mxu0 0.0
    %954 = vmatprep.subr.mxu0 0.0
    %955 = vmatpush2.msra.mxu0 0.0
    %956 = vmatprep.subr.mxu0 0.0
    %957 = vmatpush2.msra.mxu0 0.0
    %958 = vmatprep.subr.mxu0 0.0
    %959 = vmatpush2.msra.mxu0 0.0
    %960 = vmatprep.subr.mxu0 0.0
    %961 = vmatpush2.msra.mxu0 0.0
    %962 = vmatprep.subr.mxu0 0.0
    %963 = vmatpush2.msra.mxu0 0.0
    %964 = vmatprep.subr.mxu0 0.0
    %965 = vmatpush2.msra.mxu0 0.0
    %966 = vmatprep.subr.mxu0 0.0
    %967 = vmatpush2.msra.mxu0 0.0
    %968 = vmatprep.subr.mxu0 0.0
    %969 = vmatpush2.msra.mxu0 0.0
    %970 = vmatprep.subr.mxu0 0.0
    %971 = vmatpush2.msra.mxu0 0.0
    %972 = vmatprep.subr.mxu0 0.0
    %973 = vmatpush2.msra.mxu0 0.0
    %974 = vmatprep.subr.mxu0 0.0
    %975 = vmatpush2.msra.mxu0 0.0
    %976 = vmatprep.mubr.f32.mxu0 0.0
    %977 = vmatmul.mubr.f32.gmra.mxu0 %v87
    %v978 = vpop.f32.mrf.mxu0
    %v979 = vadd.f32 %v908, %v978
    %v980 = vpop.f32.mrf.mxu0
    %v981 = vadd.f32 %v910, %v980
    %982 = vdwg.mxu0
    %983 = vmatprep.subr.mxu0 %v211
    %984 = vmatpush1.msra.mxu0 %v210
    %985 = vmatprep.subr.mxu0 %v203
    %986 = vmatpush1.msra.mxu0 %v202
    %987 = vmatprep.subr.mxu0 %v195
    %988 = vmatpush1.msra.mxu0 %v194
    %989 = vmatprep.subr.mxu0 %v187
    %990 = vmatpush1.msra.mxu0 %v186
    %991 = vmatprep.subr.mxu0 %v179
    %992 = vmatpush1.msra.mxu0 %v178
    %993 = vmatprep.subr.mxu0 %v171
    %994 = vmatpush1.msra.mxu0 %v170
    %995 = vmatprep.subr.mxu0 %v163
    %996 = vmatpush1.msra.mxu0 %v162
    %997 = vmatprep.subr.mxu0 %v155
    %998 = vmatpush1.msra.mxu0 %v154
    %999 = vmatprep.subr.mxu0 %v147
    %1000 = vmatpush1.msra.mxu0 %v146
    %1001 = vmatprep.subr.mxu0 %v139
    %1002 = vmatpush1.msra.mxu0 %v138
    %1003 = vmatprep.subr.mxu0 %v131
    %1004 = vmatpush1.msra.mxu0 %v130
    %1005 = vmatprep.subr.mxu0 %v123
    %1006 = vmatpush1.msra.mxu0 %v122
    %1007 = vmatprep.subr.mxu0 %v115
    %1008 = vmatpush1.msra.mxu0 %v114
    %1009 = vmatprep.subr.mxu0 %v107
    %1010 = vmatpush1.msra.mxu0 %v106
    %1011 = vmatprep.subr.mxu0 %v99
    %1012 = vmatpush1.msra.mxu0 %v98
    %1013 = vmatprep.subr.mxu0 %v91
    %1014 = vmatpush1.msra.mxu0 %v90
    %1015 = vmatprep.subr.mxu0 %v339
    %1016 = vmatpush2.msra.mxu0 %v338
    %1017 = vmatprep.subr.mxu0 %v331
    %1018 = vmatpush2.msra.mxu0 %v330
    %1019 = vmatprep.subr.mxu0 %v323
    %1020 = vmatpush2.msra.mxu0 %v322
    %1021 = vmatprep.subr.mxu0 %v315
    %1022 = vmatpush2.msra.mxu0 %v314
    %1023 = vmatprep.subr.mxu0 %v307
    %1024 = vmatpush2.msra.mxu0 %v306
    %1025 = vmatprep.subr.mxu0 %v299
    %1026 = vmatpush2.msra.mxu0 %v298
    %1027 = vmatprep.subr.mxu0 %v291
    %1028 = vmatpush2.msra.mxu0 %v290
    %1029 = vmatprep.subr.mxu0 %v283
    %1030 = vmatpush2.msra.mxu0 %v282
    %1031 = vmatprep.subr.mxu0 %v275
    %1032 = vmatpush2.msra.mxu0 %v274
    %1033 = vmatprep.subr.mxu0 %v267
    %1034 = vmatpush2.msra.mxu0 %v266
    %1035 = vmatprep.subr.mxu0 %v259
    %1036 = vmatpush2.msra.mxu0 %v258
    %1037 = vmatprep.subr.mxu0 %v251
    %1038 = vmatpush2.msra.mxu0 %v250
    %1039 = vmatprep.subr.mxu0 %v243
    %1040 = vmatpush2.msra.mxu0 %v242
    %1041 = vmatprep.subr.mxu0 %v235
    %1042 = vmatpush2.msra.mxu0 %v234
    %1043 = vmatprep.subr.mxu0 %v227
    %1044 = vmatpush2.msra.mxu0 %v226
    %1045 = vmatprep.subr.mxu0 %v219
    %1046 = vmatpush2.msra.mxu0 %v218
    %1047 = vmatprep.mubr.f32.mxu0 %v84
    %1048 = vmatmul.mubr.f32.gmra.mxu0 %v83
    %v1049 = vpop.f32.mrf.mxu0
    %v1050 = vadd.f32 %v741, %v1049
    %v1051 = vpop.f32.mrf.mxu0
    %v1052 = vadd.f32 %v745, %v1051
    %1053 = vdwg.mxu0
    %1054 = vmatprep.subr.mxu0 %v467
    %1055 = vmatpush1.msra.mxu0 %v466
    %1056 = vmatprep.subr.mxu0 %v459
    %1057 = vmatpush1.msra.mxu0 %v458
    %1058 = vmatprep.subr.mxu0 %v451
    %1059 = vmatpush1.msra.mxu0 %v450
    %1060 = vmatprep.subr.mxu0 %v443
    %1061 = vmatpush1.msra.mxu0 %v442
    %1062 = vmatprep.subr.mxu0 %v435
    %1063 = vmatpush1.msra.mxu0 %v434
    %1064 = vmatprep.subr.mxu0 %v427
    %1065 = vmatpush1.msra.mxu0 %v426
    %1066 = vmatprep.subr.mxu0 %v419
    %1067 = vmatpush1.msra.mxu0 %v418
    %1068 = vmatprep.subr.mxu0 %v411
    %1069 = vmatpush1.msra.mxu0 %v410
    %1070 = vmatprep.subr.mxu0 %v403
    %1071 = vmatpush1.msra.mxu0 %v402
    %1072 = vmatprep.subr.mxu0 %v395
    %1073 = vmatpush1.msra.mxu0 %v394
    %1074 = vmatprep.subr.mxu0 %v387
    %1075 = vmatpush1.msra.mxu0 %v386
    %1076 = vmatprep.subr.mxu0 %v379
    %1077 = vmatpush1.msra.mxu0 %v378
    %1078 = vmatprep.subr.mxu0 %v371
    %1079 = vmatpush1.msra.mxu0 %v370
    %1080 = vmatprep.subr.mxu0 %v363
    %1081 = vmatpush1.msra.mxu0 %v362
    %1082 = vmatprep.subr.mxu0 %v355
    %1083 = vmatpush1.msra.mxu0 %v354
    %1084 = vmatprep.subr.mxu0 %v347
    %1085 = vmatpush1.msra.mxu0 %v346
    %1086 = vmatprep.subr.mxu0 %v595
    %1087 = vmatpush2.msra.mxu0 %v594
    %1088 = vmatprep.subr.mxu0 %v587
    %1089 = vmatpush2.msra.mxu0 %v586
    %1090 = vmatprep.subr.mxu0 %v579
    %1091 = vmatpush2.msra.mxu0 %v578
    %1092 = vmatprep.subr.mxu0 %v571
    %1093 = vmatpush2.msra.mxu0 %v570
    %1094 = vmatprep.subr.mxu0 %v563
    %1095 = vmatpush2.msra.mxu0 %v562
    %1096 = vmatprep.subr.mxu0 %v555
    %1097 = vmatpush2.msra.mxu0 %v554
    %1098 = vmatprep.subr.mxu0 %v547
    %1099 = vmatpush2.msra.mxu0 %v546
    %1100 = vmatprep.subr.mxu0 %v539
    %1101 = vmatpush2.msra.mxu0 %v538
    %1102 = vmatprep.subr.mxu0 %v531
    %1103 = vmatpush2.msra.mxu0 %v530
    %1104 = vmatprep.subr.mxu0 %v523
    %1105 = vmatpush2.msra.mxu0 %v522
    %1106 = vmatprep.subr.mxu0 %v515
    %1107 = vmatpush2.msra.mxu0 %v514
    %1108 = vmatprep.subr.mxu0 %v507
    %1109 = vmatpush2.msra.mxu0 %v506
    %1110 = vmatprep.subr.mxu0 %v499
    %1111 = vmatpush2.msra.mxu0 %v498
    %1112 = vmatprep.subr.mxu0 %v491
    %1113 = vmatpush2.msra.mxu0 %v490
    %1114 = vmatprep.subr.mxu0 %v483
    %1115 = vmatpush2.msra.mxu0 %v482
    %1116 = vmatprep.subr.mxu0 %v475
    %1117 = vmatpush2.msra.mxu0 %v474
    %1118 = vmatprep.mubr.f32.mxu0 %v86
    %1119 = vmatmul.mubr.f32.gmra.mxu0 %v85
    %v1120 = vpop.f32.mrf.mxu0
    %v1121 = vadd.f32 %v1050, %v1120
    %v1122 = vpop.f32.mrf.mxu0
    %v1123 = vadd.f32 %v1052, %v1122
    %1124 = vdwg.mxu0
    %1125 = vmatprep.subr.mxu0 %v723
    %1126 = vmatpush1.msra.mxu0 %v722
    %1127 = vmatprep.subr.mxu0 %v715
    %1128 = vmatpush1.msra.mxu0 %v714
    %1129 = vmatprep.subr.mxu0 %v707
    %1130 = vmatpush1.msra.mxu0 %v706
    %1131 = vmatprep.subr.mxu0 %v699
    %1132 = vmatpush1.msra.mxu0 %v698
    %1133 = vmatprep.subr.mxu0 %v691
    %1134 = vmatpush1.msra.mxu0 %v690
    %1135 = vmatprep.subr.mxu0 %v683
    %1136 = vmatpush1.msra.mxu0 %v682
    %1137 = vmatprep.subr.mxu0 %v675
    %1138 = vmatpush1.msra.mxu0 %v674
    %1139 = vmatprep.subr.mxu0 %v667
    %1140 = vmatpush1.msra.mxu0 %v666
    %1141 = vmatprep.subr.mxu0 %v659
    %1142 = vmatpush1.msra.mxu0 %v658
    %1143 = vmatprep.subr.mxu0 %v651
    %1144 = vmatpush1.msra.mxu0 %v650
    %1145 = vmatprep.subr.mxu0 %v643
    %1146 = vmatpush1.msra.mxu0 %v642
    %1147 = vmatprep.subr.mxu0 %v635
    %1148 = vmatpush1.msra.mxu0 %v634
    %1149 = vmatprep.subr.mxu0 %v627
    %1150 = vmatpush1.msra.mxu0 %v626
    %1151 = vmatprep.subr.mxu0 %v619
    %1152 = vmatpush1.msra.mxu0 %v618
    %1153 = vmatprep.subr.mxu0 %v611
    %1154 = vmatpush1.msra.mxu0 %v610
    %1155 = vmatprep.subr.mxu0 %v603
    %1156 = vmatpush1.msra.mxu0 %v602
    %1157 = vmatprep.subr.mxu0 0.0
    %1158 = vmatpush2.msra.mxu0 0.0
    %1159 = vmatprep.subr.mxu0 0.0
    %1160 = vmatpush2.msra.mxu0 0.0
    %1161 = vmatprep.subr.mxu0 0.0
    %1162 = vmatpush2.msra.mxu0 0.0
    %1163 = vmatprep.subr.mxu0 0.0
    %1164 = vmatpush2.msra.mxu0 0.0
    %1165 = vmatprep.subr.mxu0 0.0
    %1166 = vmatpush2.msra.mxu0 0.0
    %1167 = vmatprep.subr.mxu0 0.0
    %1168 = vmatpush2.msra.mxu0 0.0
    %1169 = vmatprep.subr.mxu0 0.0
    %1170 = vmatpush2.msra.mxu0 0.0
    %1171 = vmatprep.subr.mxu0 0.0
    %1172 = vmatpush2.msra.mxu0 0.0
    %1173 = vmatprep.subr.mxu0 0.0
    %1174 = vmatpush2.msra.mxu0 0.0
    %1175 = vmatprep.subr.mxu0 0.0
    %1176 = vmatpush2.msra.mxu0 0.0
    %1177 = vmatprep.subr.mxu0 0.0
    %1178 = vmatpush2.msra.mxu0 0.0
    %1179 = vmatprep.subr.mxu0 0.0
    %1180 = vmatpush2.msra.mxu0 0.0
    %1181 = vmatprep.subr.mxu0 0.0
    %1182 = vmatpush2.msra.mxu0 0.0
    %1183 = vmatprep.subr.mxu0 0.0
    %1184 = vmatpush2.msra.mxu0 0.0
    %1185 = vmatprep.subr.mxu0 0.0
    %1186 = vmatpush2.msra.mxu0 0.0
    %1187 = vmatprep.subr.mxu0 0.0
    %1188 = vmatpush2.msra.mxu0 0.0
    %1189 = vmatprep.mubr.f32.mxu0 0.0
    %1190 = vmatmul.mubr.f32.gmra.mxu0 %v87
    %v1191 = vpop.f32.mrf.mxu0
    %v1192 = vadd.f32 %v1121, %v1191
    %v1193 = vpop.f32.mrf.mxu0
    %v1194 = vadd.f32 %v1123, %v1193
    %1195 = vdwg.mxu0
    %1196 = vmatprep.subr.mxu0 %v213
    %1197 = vmatpush1.msra.mxu0 %v212
    %1198 = vmatprep.subr.mxu0 %v205
    %1199 = vmatpush1.msra.mxu0 %v204
    %1200 = vmatprep.subr.mxu0 %v197
    %1201 = vmatpush1.msra.mxu0 %v196
    %1202 = vmatprep.subr.mxu0 %v189
    %1203 = vmatpush1.msra.mxu0 %v188
    %1204 = vmatprep.subr.mxu0 %v181
    %1205 = vmatpush1.msra.mxu0 %v180
    %1206 = vmatprep.subr.mxu0 %v173
    %1207 = vmatpush1.msra.mxu0 %v172
    %1208 = vmatprep.subr.mxu0 %v165
    %1209 = vmatpush1.msra.mxu0 %v164
    %1210 = vmatprep.subr.mxu0 %v157
    %1211 = vmatpush1.msra.mxu0 %v156
    %1212 = vmatprep.subr.mxu0 %v149
    %1213 = vmatpush1.msra.mxu0 %v148
    %1214 = vmatprep.subr.mxu0 %v141
    %1215 = vmatpush1.msra.mxu0 %v140
    %1216 = vmatprep.subr.mxu0 %v133
    %1217 = vmatpush1.msra.mxu0 %v132
    %1218 = vmatprep.subr.mxu0 %v125
    %1219 = vmatpush1.msra.mxu0 %v124
    %1220 = vmatprep.subr.mxu0 %v117
    %1221 = vmatpush1.msra.mxu0 %v116
    %1222 = vmatprep.subr.mxu0 %v109
    %1223 = vmatpush1.msra.mxu0 %v108
    %1224 = vmatprep.subr.mxu0 %v101
    %1225 = vmatpush1.msra.mxu0 %v100
    %1226 = vmatprep.subr.mxu0 %v93
    %1227 = vmatpush1.msra.mxu0 %v92
    %1228 = vmatprep.subr.mxu0 %v341
    %1229 = vmatpush2.msra.mxu0 %v340
    %1230 = vmatprep.subr.mxu0 %v333
    %1231 = vmatpush2.msra.mxu0 %v332
    %1232 = vmatprep.subr.mxu0 %v325
    %1233 = vmatpush2.msra.mxu0 %v324
    %1234 = vmatprep.subr.mxu0 %v317
    %1235 = vmatpush2.msra.mxu0 %v316
    %1236 = vmatprep.subr.mxu0 %v309
    %1237 = vmatpush2.msra.mxu0 %v308
    %1238 = vmatprep.subr.mxu0 %v301
    %1239 = vmatpush2.msra.mxu0 %v300
    %1240 = vmatprep.subr.mxu0 %v293
    %1241 = vmatpush2.msra.mxu0 %v292
    %1242 = vmatprep.subr.mxu0 %v285
    %1243 = vmatpush2.msra.mxu0 %v284
    %1244 = vmatprep.subr.mxu0 %v277
    %1245 = vmatpush2.msra.mxu0 %v276
    %1246 = vmatprep.subr.mxu0 %v269
    %1247 = vmatpush2.msra.mxu0 %v268
    %1248 = vmatprep.subr.mxu0 %v261
    %1249 = vmatpush2.msra.mxu0 %v260
    %1250 = vmatprep.subr.mxu0 %v253
    %1251 = vmatpush2.msra.mxu0 %v252
    %1252 = vmatprep.subr.mxu0 %v245
    %1253 = vmatpush2.msra.mxu0 %v244
    %1254 = vmatprep.subr.mxu0 %v237
    %1255 = vmatpush2.msra.mxu0 %v236
    %1256 = vmatprep.subr.mxu0 %v229
    %1257 = vmatpush2.msra.mxu0 %v228
    %1258 = vmatprep.subr.mxu0 %v221
    %1259 = vmatpush2.msra.mxu0 %v220
    %1260 = vmatprep.mubr.f32.mxu0 %v84
    %1261 = vmatmul.mubr.f32.gmra.mxu0 %v83
    %v1262 = vpop.f32.mrf.mxu0
    %v1263 = vadd.f32 %v749, %v1262
    %v1264 = vpop.f32.mrf.mxu0
    %v1265 = vadd.f32 %v753, %v1264
    %1266 = vdwg.mxu0
    %1267 = vmatprep.subr.mxu0 %v469
    %1268 = vmatpush1.msra.mxu0 %v468
    %1269 = vmatprep.subr.mxu0 %v461
    %1270 = vmatpush1.msra.mxu0 %v460
    %1271 = vmatprep.subr.mxu0 %v453
    %1272 = vmatpush1.msra.mxu0 %v452
    %1273 = vmatprep.subr.mxu0 %v445
    %1274 = vmatpush1.msra.mxu0 %v444
    %1275 = vmatprep.subr.mxu0 %v437
    %1276 = vmatpush1.msra.mxu0 %v436
    %1277 = vmatprep.subr.mxu0 %v429
    %1278 = vmatpush1.msra.mxu0 %v428
    %1279 = vmatprep.subr.mxu0 %v421
    %1280 = vmatpush1.msra.mxu0 %v420
    %1281 = vmatprep.subr.mxu0 %v413
    %1282 = vmatpush1.msra.mxu0 %v412
    %1283 = vmatprep.subr.mxu0 %v405
    %1284 = vmatpush1.msra.mxu0 %v404
    %1285 = vmatprep.subr.mxu0 %v397
    %1286 = vmatpush1.msra.mxu0 %v396
    %1287 = vmatprep.subr.mxu0 %v389
    %1288 = vmatpush1.msra.mxu0 %v388
    %1289 = vmatprep.subr.mxu0 %v381
    %1290 = vmatpush1.msra.mxu0 %v380
    %1291 = vmatprep.subr.mxu0 %v373
    %1292 = vmatpush1.msra.mxu0 %v372
    %1293 = vmatprep.subr.mxu0 %v365
    %1294 = vmatpush1.msra.mxu0 %v364
    %1295 = vmatprep.subr.mxu0 %v357
    %1296 = vmatpush1.msra.mxu0 %v356
    %1297 = vmatprep.subr.mxu0 %v349
    %1298 = vmatpush1.msra.mxu0 %v348
    %1299 = vmatprep.subr.mxu0 %v597
    %1300 = vmatpush2.msra.mxu0 %v596
    %1301 = vmatprep.subr.mxu0 %v589
    %1302 = vmatpush2.msra.mxu0 %v588
    %1303 = vmatprep.subr.mxu0 %v581
    %1304 = vmatpush2.msra.mxu0 %v580
    %1305 = vmatprep.subr.mxu0 %v573
    %1306 = vmatpush2.msra.mxu0 %v572
    %1307 = vmatprep.subr.mxu0 %v565
    %1308 = vmatpush2.msra.mxu0 %v564
    %1309 = vmatprep.subr.mxu0 %v557
    %1310 = vmatpush2.msra.mxu0 %v556
    %1311 = vmatprep.subr.mxu0 %v549
    %1312 = vmatpush2.msra.mxu0 %v548
    %1313 = vmatprep.subr.mxu0 %v541
    %1314 = vmatpush2.msra.mxu0 %v540
    %1315 = vmatprep.subr.mxu0 %v533
    %1316 = vmatpush2.msra.mxu0 %v532
    %1317 = vmatprep.subr.mxu0 %v525
    %1318 = vmatpush2.msra.mxu0 %v524
    %1319 = vmatprep.subr.mxu0 %v517
    %1320 = vmatpush2.msra.mxu0 %v516
    %1321 = vmatprep.subr.mxu0 %v509
    %1322 = vmatpush2.msra.mxu0 %v508
    %1323 = vmatprep.subr.mxu0 %v501
    %1324 = vmatpush2.msra.mxu0 %v500
    %1325 = vmatprep.subr.mxu0 %v493
    %1326 = vmatpush2.msra.mxu0 %v492
    %1327 = vmatprep.subr.mxu0 %v485
    %1328 = vmatpush2.msra.mxu0 %v484
    %1329 = vmatprep.subr.mxu0 %v477
    %1330 = vmatpush2.msra.mxu0 %v476
    %1331 = vmatprep.mubr.f32.mxu0 %v86
    %1332 = vmatmul.mubr.f32.gmra.mxu0 %v85
    %v1333 = vpop.f32.mrf.mxu0
    %v1334 = vadd.f32 %v1263, %v1333
    %v1335 = vpop.f32.mrf.mxu0
    %v1336 = vadd.f32 %v1265, %v1335
    %1337 = vdwg.mxu0
    %1338 = vmatprep.subr.mxu0 %v725
    %1339 = vmatpush1.msra.mxu0 %v724
    %1340 = vmatprep.subr.mxu0 %v717
    %1341 = vmatpush1.msra.mxu0 %v716
    %1342 = vmatprep.subr.mxu0 %v709
    %1343 = vmatpush1.msra.mxu0 %v708
    %1344 = vmatprep.subr.mxu0 %v701
    %1345 = vmatpush1.msra.mxu0 %v700
    %1346 = vmatprep.subr.mxu0 %v693
    %1347 = vmatpush1.msra.mxu0 %v692
    %1348 = vmatprep.subr.mxu0 %v685
    %1349 = vmatpush1.msra.mxu0 %v684
    %1350 = vmatprep.subr.mxu0 %v677
    %1351 = vmatpush1.msra.mxu0 %v676
    %1352 = vmatprep.subr.mxu0 %v669
    %1353 = vmatpush1.msra.mxu0 %v668
    %1354 = vmatprep.subr.mxu0 %v661
    %1355 = vmatpush1.msra.mxu0 %v660
    %1356 = vmatprep.subr.mxu0 %v653
    %1357 = vmatpush1.msra.mxu0 %v652
    %1358 = vmatprep.subr.mxu0 %v645
    %1359 = vmatpush1.msra.mxu0 %v644
    %1360 = vmatprep.subr.mxu0 %v637
    %1361 = vmatpush1.msra.mxu0 %v636
    %1362 = vmatprep.subr.mxu0 %v629
    %1363 = vmatpush1.msra.mxu0 %v628
    %1364 = vmatprep.subr.mxu0 %v621
    %1365 = vmatpush1.msra.mxu0 %v620
    %1366 = vmatprep.subr.mxu0 %v613
    %1367 = vmatpush1.msra.mxu0 %v612
    %1368 = vmatprep.subr.mxu0 %v605
    %1369 = vmatpush1.msra.mxu0 %v604
    %1370 = vmatprep.subr.mxu0 0.0
    %1371 = vmatpush2.msra.mxu0 0.0
    %1372 = vmatprep.subr.mxu0 0.0
    %1373 = vmatpush2.msra.mxu0 0.0
    %1374 = vmatprep.subr.mxu0 0.0
    %1375 = vmatpush2.msra.mxu0 0.0
    %1376 = vmatprep.subr.mxu0 0.0
    %1377 = vmatpush2.msra.mxu0 0.0
    %1378 = vmatprep.subr.mxu0 0.0
    %1379 = vmatpush2.msra.mxu0 0.0
    %1380 = vmatprep.subr.mxu0 0.0
    %1381 = vmatpush2.msra.mxu0 0.0
    %1382 = vmatprep.subr.mxu0 0.0
    %1383 = vmatpush2.msra.mxu0 0.0
    %1384 = vmatprep.subr.mxu0 0.0
    %1385 = vmatpush2.msra.mxu0 0.0
    %1386 = vmatprep.subr.mxu0 0.0
    %1387 = vmatpush2.msra.mxu0 0.0
    %1388 = vmatprep.subr.mxu0 0.0
    %1389 = vmatpush2.msra.mxu0 0.0
    %1390 = vmatprep.subr.mxu0 0.0
    %1391 = vmatpush2.msra.mxu0 0.0
    %1392 = vmatprep.subr.mxu0 0.0
    %1393 = vmatpush2.msra.mxu0 0.0
    %1394 = vmatprep.subr.mxu0 0.0
    %1395 = vmatpush2.msra.mxu0 0.0
    %1396 = vmatprep.subr.mxu0 0.0
    %1397 = vmatpush2.msra.mxu0 0.0
    %1398 = vmatprep.subr.mxu0 0.0
    %1399 = vmatpush2.msra.mxu0 0.0
    %1400 = vmatprep.subr.mxu0 0.0
    %1401 = vmatpush2.msra.mxu0 0.0
    %1402 = vmatprep.mubr.f32.mxu0 0.0
    %1403 = vmatmul.mubr.f32.gmra.mxu0 %v87
    %v1404 = vpop.f32.mrf.mxu0
    %v1405 = vadd.f32 %v1334, %v1404
    %v1406 = vpop.f32.mrf.mxu0
    %v1407 = vadd.f32 %v1336, %v1406
    %1408 = vdwg.mxu0
    %1409 = vmatprep.subr.mxu0 %v215
    %1410 = vmatpush1.msra.mxu0 %v214
    %1411 = vmatprep.subr.mxu0 %v207
    %1412 = vmatpush1.msra.mxu0 %v206
    %1413 = vmatprep.subr.mxu0 %v199
    %1414 = vmatpush1.msra.mxu0 %v198
    %1415 = vmatprep.subr.mxu0 %v191
    %1416 = vmatpush1.msra.mxu0 %v190
    %1417 = vmatprep.subr.mxu0 %v183
    %1418 = vmatpush1.msra.mxu0 %v182
    %1419 = vmatprep.subr.mxu0 %v175
    %1420 = vmatpush1.msra.mxu0 %v174
    %1421 = vmatprep.subr.mxu0 %v167
    %1422 = vmatpush1.msra.mxu0 %v166
    %1423 = vmatprep.subr.mxu0 %v159
    %1424 = vmatpush1.msra.mxu0 %v158
    %1425 = vmatprep.subr.mxu0 %v151
    %1426 = vmatpush1.msra.mxu0 %v150
    %1427 = vmatprep.subr.mxu0 %v143
    %1428 = vmatpush1.msra.mxu0 %v142
    %1429 = vmatprep.subr.mxu0 %v135
    %1430 = vmatpush1.msra.mxu0 %v134
    %1431 = vmatprep.subr.mxu0 %v127
    %1432 = vmatpush1.msra.mxu0 %v126
    %1433 = vmatprep.subr.mxu0 %v119
    %1434 = vmatpush1.msra.mxu0 %v118
    %1435 = vmatprep.subr.mxu0 %v111
    %1436 = vmatpush1.msra.mxu0 %v110
    %1437 = vmatprep.subr.mxu0 %v103
    %1438 = vmatpush1.msra.mxu0 %v102
    %1439 = vmatprep.subr.mxu0 %v95
    %1440 = vmatpush1.msra.mxu0 %v94
    %1441 = vmatprep.subr.mxu0 %v343
    %1442 = vmatpush2.msra.mxu0 %v342
    %1443 = vmatprep.subr.mxu0 %v335
    %1444 = vmatpush2.msra.mxu0 %v334
    %1445 = vmatprep.subr.mxu0 %v327
    %1446 = vmatpush2.msra.mxu0 %v326
    %1447 = vmatprep.subr.mxu0 %v319
    %1448 = vmatpush2.msra.mxu0 %v318
    %1449 = vmatprep.subr.mxu0 %v311
    %1450 = vmatpush2.msra.mxu0 %v310
    %1451 = vmatprep.subr.mxu0 %v303
    %1452 = vmatpush2.msra.mxu0 %v302
    %1453 = vmatprep.subr.mxu0 %v295
    %1454 = vmatpush2.msra.mxu0 %v294
    %1455 = vmatprep.subr.mxu0 %v287
    %1456 = vmatpush2.msra.mxu0 %v286
    %1457 = vmatprep.subr.mxu0 %v279
    %1458 = vmatpush2.msra.mxu0 %v278
    %1459 = vmatprep.subr.mxu0 %v271
    %1460 = vmatpush2.msra.mxu0 %v270
    %1461 = vmatprep.subr.mxu0 %v263
    %1462 = vmatpush2.msra.mxu0 %v262
    %1463 = vmatprep.subr.mxu0 %v255
    %1464 = vmatpush2.msra.mxu0 %v254
    %1465 = vmatprep.subr.mxu0 %v247
    %1466 = vmatpush2.msra.mxu0 %v246
    %1467 = vmatprep.subr.mxu0 %v239
    %1468 = vmatpush2.msra.mxu0 %v238
    %1469 = vmatprep.subr.mxu0 %v231
    %1470 = vmatpush2.msra.mxu0 %v230
    %1471 = vmatprep.subr.mxu0 %v223
    %1472 = vmatpush2.msra.mxu0 %v222
    %1473 = vmatprep.mubr.f32.mxu0 %v84
    %1474 = vmatmul.mubr.f32.gmra.mxu0 %v83
    %v1475 = vpop.f32.mrf.mxu0
    %v1476 = vadd.f32 %v757, %v1475
    %v1477 = vpop.f32.mrf.mxu0
    %v1478 = vadd.f32 %v761, %v1477
    %1479 = vdwg.mxu0
    %1480 = vmatprep.subr.mxu0 %v471
    %1481 = vmatpush1.msra.mxu0 %v470
    %1482 = vmatprep.subr.mxu0 %v463
    %1483 = vmatpush1.msra.mxu0 %v462
    %1484 = vmatprep.subr.mxu0 %v455
    %1485 = vmatpush1.msra.mxu0 %v454
    %1486 = vmatprep.subr.mxu0 %v447
    %1487 = vmatpush1.msra.mxu0 %v446
    %1488 = vmatprep.subr.mxu0 %v439
    %1489 = vmatpush1.msra.mxu0 %v438
    %1490 = vmatprep.subr.mxu0 %v431
    %1491 = vmatpush1.msra.mxu0 %v430
    %1492 = vmatprep.subr.mxu0 %v423
    %1493 = vmatpush1.msra.mxu0 %v422
    %1494 = vmatprep.subr.mxu0 %v415
    %1495 = vmatpush1.msra.mxu0 %v414
    %1496 = vmatprep.subr.mxu0 %v407
    %1497 = vmatpush1.msra.mxu0 %v406
    %1498 = vmatprep.subr.mxu0 %v399
    %1499 = vmatpush1.msra.mxu0 %v398
    %1500 = vmatprep.subr.mxu0 %v391
    %1501 = vmatpush1.msra.mxu0 %v390
    %1502 = vmatprep.subr.mxu0 %v383
    %1503 = vmatpush1.msra.mxu0 %v382
    %1504 = vmatprep.subr.mxu0 %v375
    %1505 = vmatpush1.msra.mxu0 %v374
    %1506 = vmatprep.subr.mxu0 %v367
    %1507 = vmatpush1.msra.mxu0 %v366
    %1508 = vmatprep.subr.mxu0 %v359
    %1509 = vmatpush1.msra.mxu0 %v358
    %1510 = vmatprep.subr.mxu0 %v351
    %1511 = vmatpush1.msra.mxu0 %v350
    %1512 = vmatprep.subr.mxu0 %v599
    %1513 = vmatpush2.msra.mxu0 %v598
    %1514 = vmatprep.subr.mxu0 %v591
    %1515 = vmatpush2.msra.mxu0 %v590
    %1516 = vmatprep.subr.mxu0 %v583
    %1517 = vmatpush2.msra.mxu0 %v582
    %1518 = vmatprep.subr.mxu0 %v575
    %1519 = vmatpush2.msra.mxu0 %v574
    %1520 = vmatprep.subr.mxu0 %v567
    %1521 = vmatpush2.msra.mxu0 %v566
    %1522 = vmatprep.subr.mxu0 %v559
    %1523 = vmatpush2.msra.mxu0 %v558
    %1524 = vmatprep.subr.mxu0 %v551
    %1525 = vmatpush2.msra.mxu0 %v550
    %1526 = vmatprep.subr.mxu0 %v543
    %1527 = vmatpush2.msra.mxu0 %v542
    %1528 = vmatprep.subr.mxu0 %v535
    %1529 = vmatpush2.msra.mxu0 %v534
    %1530 = vmatprep.subr.mxu0 %v527
    %1531 = vmatpush2.msra.mxu0 %v526
    %1532 = vmatprep.subr.mxu0 %v519
    %1533 = vmatpush2.msra.mxu0 %v518
    %1534 = vmatprep.subr.mxu0 %v511
    %1535 = vmatpush2.msra.mxu0 %v510
    %1536 = vmatprep.subr.mxu0 %v503
    %1537 = vmatpush2.msra.mxu0 %v502
    %1538 = vmatprep.subr.mxu0 %v495
    %1539 = vmatpush2.msra.mxu0 %v494
    %1540 = vmatprep.subr.mxu0 %v487
    %1541 = vmatpush2.msra.mxu0 %v486
    %1542 = vmatprep.subr.mxu0 %v479
    %1543 = vmatpush2.msra.mxu0 %v478
    %1544 = vmatprep.mubr.f32.mxu0 %v86
    %1545 = vmatmul.mubr.f32.gmra.mxu0 %v85
    %v1546 = vpop.f32.mrf.mxu0
    %v1547 = vadd.f32 %v1476, %v1546
    %v1548 = vpop.f32.mrf.mxu0
    %v1549 = vadd.f32 %v1478, %v1548
    %1550 = vdwg.mxu0
    %1551 = vmatprep.subr.mxu0 %v727
    %1552 = vmatpush1.msra.mxu0 %v726
    %1553 = vmatprep.subr.mxu0 %v719
    %1554 = vmatpush1.msra.mxu0 %v718
    %1555 = vmatprep.subr.mxu0 %v711
    %1556 = vmatpush1.msra.mxu0 %v710
    %1557 = vmatprep.subr.mxu0 %v703
    %1558 = vmatpush1.msra.mxu0 %v702
    %1559 = vmatprep.subr.mxu0 %v695
    %1560 = vmatpush1.msra.mxu0 %v694
    %1561 = vmatprep.subr.mxu0 %v687
    %1562 = vmatpush1.msra.mxu0 %v686
    %1563 = vmatprep.subr.mxu0 %v679
    %1564 = vmatpush1.msra.mxu0 %v678
    %1565 = vmatprep.subr.mxu0 %v671
    %1566 = vmatpush1.msra.mxu0 %v670
    %1567 = vmatprep.subr.mxu0 %v663
    %1568 = vmatpush1.msra.mxu0 %v662
    %1569 = vmatprep.subr.mxu0 %v655
    %1570 = vmatpush1.msra.mxu0 %v654
    %1571 = vmatprep.subr.mxu0 %v647
    %1572 = vmatpush1.msra.mxu0 %v646
    %1573 = vmatprep.subr.mxu0 %v639
    %1574 = vmatpush1.msra.mxu0 %v638
    %1575 = vmatprep.subr.mxu0 %v631
    %1576 = vmatpush1.msra.mxu0 %v630
    %1577 = vmatprep.subr.mxu0 %v623
    %1578 = vmatpush1.msra.mxu0 %v622
    %1579 = vmatprep.subr.mxu0 %v615
    %1580 = vmatpush1.msra.mxu0 %v614
    %1581 = vmatprep.subr.mxu0 %v607
    %1582 = vmatpush1.msra.mxu0 %v606
    %1583 = vmatprep.subr.mxu0 0.0
    %1584 = vmatpush2.msra.mxu0 0.0
    %1585 = vmatprep.subr.mxu0 0.0
    %1586 = vmatpush2.msra.mxu0 0.0
    %1587 = vmatprep.subr.mxu0 0.0
    %1588 = vmatpush2.msra.mxu0 0.0
    %1589 = vmatprep.subr.mxu0 0.0
    %1590 = vmatpush2.msra.mxu0 0.0
    %1591 = vmatprep.subr.mxu0 0.0
    %1592 = vmatpush2.msra.mxu0 0.0
    %1593 = vmatprep.subr.mxu0 0.0
    %1594 = vmatpush2.msra.mxu0 0.0
    %1595 = vmatprep.subr.mxu0 0.0
    %1596 = vmatpush2.msra.mxu0 0.0
    %1597 = vmatprep.subr.mxu0 0.0
    %1598 = vmatpush2.msra.mxu0 0.0
    %1599 = vmatprep.subr.mxu0 0.0
    %1600 = vmatpush2.msra.mxu0 0.0
    %1601 = vmatprep.subr.mxu0 0.0
    %1602 = vmatpush2.msra.mxu0 0.0
    %1603 = vmatprep.subr.mxu0 0.0
    %1604 = vmatpush2.msra.mxu0 0.0
    %1605 = vmatprep.subr.mxu0 0.0
    %1606 = vmatpush2.msra.mxu0 0.0
    %1607 = vmatprep.subr.mxu0 0.0
    %1608 = vmatpush2.msra.mxu0 0.0
    %1609 = vmatprep.subr.mxu0 0.0
    %1610 = vmatpush2.msra.mxu0 0.0
    %1611 = vmatprep.subr.mxu0 0.0
    %1612 = vmatpush2.msra.mxu0 0.0
    %1613 = vmatprep.subr.mxu0 0.0
    %1614 = vmatpush2.msra.mxu0 0.0
    %1615 = vmatprep.mubr.f32.mxu0 0.0
    %1616 = vmatmul.mubr.f32.gmra.mxu0 %v87
    %v1617 = vpop.f32.mrf.mxu0
    %v1618 = vadd.f32 %v1547, %v1617
    %v1619 = vpop.f32.mrf.mxu0
    %v1620 = vadd.f32 %v1549, %v1619
    %1621 = vdwg.mxu0
    %v1622 = vmax.f32 %v979, 0.0
    %v1623 = vmax.f32 %v981, 0.0
    %v1624 = vmax.f32 %v1192, 0.0
    %v1625 = vmax.f32 %v1194, 0.0
    %v1626 = vmax.f32 %v1405, 0.0
    %v1627 = vmax.f32 %v1407, 0.0
    %v1628 = vmax.f32 %v1618, 0.0
    %v1629 = vmax.f32 %v1620, 0.0
    %v1630 = vmax.f32 %v1622, %v1624
    %v1631 = vmax.f32 %v1623, %v1625
    %v1632 = vmax.f32 %v1630, %v1626
    %v1633 = vmax.f32 %v1631, %v1627
    %v1634 = vmax.f32 %v1632, %v1628
    %v1635 = vmax.f32 %v1633, %v1629
    %v1636 = vld [vmem:[#allocation8] sm:$0xff]
    %v1637 = vld [vmem:[#allocation8 + $0x8] sm:$0xff]
    %v1638 = vld [vmem:[#allocation8 + $0x10] sm:$0xff]
    %v1639 = vld [vmem:[#allocation8 + $0x18] sm:$0xff]
    %v1640 = vld [vmem:[#allocation8 + $0x20] sm:$0xff]
    %v1641 = vld [vmem:[#allocation8 + $0x28] sm:$0xff]
    %v1642 = vld [vmem:[#allocation8 + $0x30] sm:$0xff]
    %v1643 = vld [vmem:[#allocation8 + $0x38] sm:$0xff]
    %v1644 = vld [vmem:[#allocation8 + $0x40] sm:$0xff]
    %v1645 = vld [vmem:[#allocation8 + $0x48] sm:$0xff]
    %v1646 = vld [vmem:[#allocation8 + $0x50] sm:$0xff]
    %v1647 = vld [vmem:[#allocation8 + $0x58] sm:$0xff]
    %v1648 = vld [vmem:[#allocation8 + $0x60] sm:$0xff]
    %v1649 = vld [vmem:[#allocation8 + $0x68] sm:$0xff]
    %v1650 = vld [vmem:[#allocation8 + $0x70] sm:$0xff]
    %v1651 = vld [vmem:[#allocation8 + $0x78] sm:$0xff]
    %v1652 = vld [vmem:[#allocation8 + $0x80] sm:$0xff]
    %v1653 = vld [vmem:[#allocation8 + $0x88] sm:$0xff]
    %v1654 = vld [vmem:[#allocation8 + $0x90] sm:$0xff]
    %v1655 = vld [vmem:[#allocation8 + $0x98] sm:$0xff]
    %v1656 = vld [vmem:[#allocation8 + $0xa0] sm:$0xff]
    %v1657 = vld [vmem:[#allocation8 + $0xa8] sm:$0xff]
    %v1658 = vld [vmem:[#allocation8 + $0xb0] sm:$0xff]
    %v1659 = vld [vmem:[#allocation8 + $0xb8] sm:$0xff]
    %v1660 = vld [vmem:[#allocation8 + $0xc0] sm:$0xff]
    %v1661 = vld [vmem:[#allocation8 + $0xc8] sm:$0xff]
    %v1662 = vld [vmem:[#allocation8 + $0xd0] sm:$0xff]
    %v1663 = vld [vmem:[#allocation8 + $0xd8] sm:$0xff]
    %v1664 = vld [vmem:[#allocation8 + $0xe0] sm:$0xff]
    %v1665 = vld [vmem:[#allocation8 + $0xe8] sm:$0xff]
    %v1666 = vld [vmem:[#allocation8 + $0xf0] sm:$0xff]
    %v1667 = vld [vmem:[#allocation8 + $0xf8] sm:$0xff]
    %v1668 = vld [vmem:[#allocation10] sm:$0x1]
    %v1670 = vlaneseq
    %v1671 = vshrl.u32 %v1670, 7
    %v1672 = vsub.s32 0, %v1671
    %v1673 = vrot.slane %v1668, %v1672
    %1675 = vmatprep.subr.mxu0 0.0
    %1676 = vmatpush1.msra.mxu0 %v1651
    %1677 = vmatprep.subr.mxu0 0.0
    %1678 = vmatpush1.msra.mxu0 %v1650
    %1679 = vmatprep.subr.mxu0 0.0
    %1680 = vmatpush1.msra.mxu0 %v1649
    %1681 = vmatprep.subr.mxu0 0.0
    %1682 = vmatpush1.msra.mxu0 %v1648
    %1683 = vmatprep.subr.mxu0 0.0
    %1684 = vmatpush1.msra.mxu0 %v1647
    %1685 = vmatprep.subr.mxu0 0.0
    %1686 = vmatpush1.msra.mxu0 %v1646
    %1687 = vmatprep.subr.mxu0 0.0
    %1688 = vmatpush1.msra.mxu0 %v1645
    %1689 = vmatprep.subr.mxu0 0.0
    %1690 = vmatpush1.msra.mxu0 %v1644
    %1691 = vmatprep.subr.mxu0 0.0
    %1692 = vmatpush1.msra.mxu0 %v1643
    %1693 = vmatprep.subr.mxu0 0.0
    %1694 = vmatpush1.msra.mxu0 %v1642
    %1695 = vmatprep.subr.mxu0 0.0
    %1696 = vmatpush1.msra.mxu0 %v1641
    %1697 = vmatprep.subr.mxu0 0.0
    %1698 = vmatpush1.msra.mxu0 %v1640
    %1699 = vmatprep.subr.mxu0 0.0
    %1700 = vmatpush1.msra.mxu0 %v1639
    %1701 = vmatprep.subr.mxu0 0.0
    %1702 = vmatpush1.msra.mxu0 %v1638
    %1703 = vmatprep.subr.mxu0 0.0
    %1704 = vmatpush1.msra.mxu0 %v1637
    %1705 = vmatprep.subr.mxu0 0.0
    %1706 = vmatpush1.msra.mxu0 %v1636
    %1707 = vmatprep.subr.mxu0 0.0
    %1708 = vmatpush2.msra.mxu0 %v1667
    %1709 = vmatprep.subr.mxu0 0.0
    %1710 = vmatpush2.msra.mxu0 %v1666
    %1711 = vmatprep.subr.mxu0 0.0
    %1712 = vmatpush2.msra.mxu0 %v1665
    %1713 = vmatprep.subr.mxu0 0.0
    %1714 = vmatpush2.msra.mxu0 %v1664
    %1715 = vmatprep.subr.mxu0 0.0
    %1716 = vmatpush2.msra.mxu0 %v1663
    %1717 = vmatprep.subr.mxu0 0.0
    %1718 = vmatpush2.msra.mxu0 %v1662
    %1719 = vmatprep.subr.mxu0 0.0
    %1720 = vmatpush2.msra.mxu0 %v1661
    %1721 = vmatprep.subr.mxu0 0.0
    %1722 = vmatpush2.msra.mxu0 %v1660
    %1723 = vmatprep.subr.mxu0 0.0
    %1724 = vmatpush2.msra.mxu0 %v1659
    %1725 = vmatprep.subr.mxu0 0.0
    %1726 = vmatpush2.msra.mxu0 %v1658
    %1727 = vmatprep.subr.mxu0 0.0
    %1728 = vmatpush2.msra.mxu0 %v1657
    %1729 = vmatprep.subr.mxu0 0.0
    %1730 = vmatpush2.msra.mxu0 %v1656
    %1731 = vmatprep.subr.mxu0 0.0
    %1732 = vmatpush2.msra.mxu0 %v1655
    %1733 = vmatprep.subr.mxu0 0.0
    %1734 = vmatpush2.msra.mxu0 %v1654
    %1735 = vmatprep.subr.mxu0 0.0
    %1736 = vmatpush2.msra.mxu0 %v1653
    %1737 = vmatprep.subr.mxu0 0.0
    %1738 = vmatpush2.msra.mxu0 %v1652
    %1739 = vmatprep.mubr.f32.mxu0 %v1635
    %1740 = vmatmul.mubr.f32.gmra.mxu0 %v1634
    %v1741 = vpop.f32.mrf.mxu0
    %v1742 = vadd.f32 %v1673, %v1741
    %v1743 = vpop.f32.mrf.mxu0
    %1744 = vdwg.mxu0
    %1745 = vst [vmem:[#allocation11] sm:$0xff] %v1742
    // Predicated region
    $region42: #{tpu_custom_call.1} parent=1 // pred_check
      _
    $region43: #{tpu_custom_call.1} parent=1 // pred_check_branch
      %1747 = sbr.rel (0) target = $region45
    $region44: #{tpu_custom_call.1} parent=1 // pred_region
      %s1749 = ssub.s32 128, 128
      %1750 = vsyncadd [#allocation4], %s1749
      %s1752 = sshll.u32 [#allocation11], 4
      %s1753 = int_to_ptr.vmem [resolvable:$true] %s1752
      %1755 = dma.vmem_to_hbm [thread:$0]  %s1753, 128, %s5, [#allocation4]
    $region45: #{tpu_custom_call.1} parent=1 // pred_fallthru
      _
    // Predicated region
    $region46: #{tpu_custom_call.1} parent=1 // pred_check
      _
    $region47: #{tpu_custom_call.1} parent=1 // pred_check_branch
      %1757 = sbr.rel (0) target = $region49
    $region48: #{tpu_custom_call.1} parent=1 // pred_region
      %1758 = dma.done [#allocation4], 128
    $region49: #{tpu_custom_call.1} parent=1 // pred_fallthru
      _
    %1759 = vsyncpa [#allocation3], 1
    %1760 = vsyncpa [#allocation6], 1
    %1761 = vsyncpa [#allocation9], 1
    %1762 = vsyncpa [#allocation4], 1

</llo_original>
